<compile_context>
chip_gen: v5e
topology: v5e:2x2
jax: 0.10.0
libtpu: 0.0.40
codegen_flags: <defaults>
</compile_context>

<pallas_src>
import functools
import math

import jax
import jax.numpy as jnp
from jax.experimental import pallas as pl
from jax.experimental.pallas import tpu as pltpu


def lstm_kernel(*refs, B, S, H, num_layers):
    # refs = (x, [wih, whh, b] * L, wcls, bcls, out, gates_scratch, hs_scratch)
    x_ref = refs[0]
    layer_refs = refs[1:1 + 3 * num_layers]
    wcls_ref = refs[1 + 3 * num_layers]
    bcls_ref = refs[2 + 3 * num_layers]
    o_ref = refs[3 + 3 * num_layers]
    gates_ref = refs[4 + 3 * num_layers]          # VMEM scratch [S*B, 4H] f32
    hs_ref = refs[5 + 3 * num_layers]             # VMEM scratch [S*B, H]  f32

    for l in range(num_layers):                   # static layer loop
        wih = layer_refs[3 * l][...]              # [in_l, 4H] bf16
        whh = layer_refs[3 * l + 1][...]          # [H, 4H]    bf16
        b = layer_refs[3 * l + 2][...]            # [1, 4H]    f32

        # Time-major flattened activations: row (t*B + b) holds x[b, t, :].
        seq_in = x_ref[...] if l == 0 else hs_ref[...]

        # Input projection for every timestep at once (one big bf16 MXU matmul),
        # written straight to VMEM scratch so only one step's slice is live at a
        # time inside the recurrence.
        gates_ref[...] = jnp.dot(seq_in.astype(jnp.bfloat16), wih,
                                 preferred_element_type=jnp.float32) + b

        h = jnp.zeros((B, H), jnp.float32)
        c = jnp.zeros((B, H), jnp.float32)
        for t in range(S):                        # static unroll; S is small
            # bf16 MXU operands, f32 accumulation; all gate/state math in f32
            # (v5e VPU/EUP have no bf16, and the MXU is bf16-native everywhere).
            g_all = gates_ref[t * B:(t + 1) * B, :] + jnp.dot(
                h.astype(jnp.bfloat16), whh, preferred_element_type=jnp.float32)
            i_g = jax.nn.sigmoid(g_all[:, 0 * H:1 * H])
            f_g = jax.nn.sigmoid(g_all[:, 1 * H:2 * H])
            g_g = jnp.tanh(g_all[:, 2 * H:3 * H])
            o_g = jax.nn.sigmoid(g_all[:, 3 * H:4 * H])
            c = f_g * c + i_g * g_g
            h = o_g * jnp.tanh(c)
            hs_ref[t * B:(t + 1) * B, :] = h      # bound live range to one step
        # TODO(synk): inter-layer dropout (p=0.2) is identity with num_layers==1
        # and eval-mode semantics, so it is intentionally omitted.

    # Classifier over all timesteps at once. wcls/bcls are zero-padded to 128
    # output lanes in the wrapper, so this store is an unmasked full-vreg vst.
    logits = jnp.dot(hs_ref[...].astype(jnp.bfloat16), wcls_ref[...],
                     preferred_element_type=jnp.float32) + bcls_ref[...]
    o_ref[...] = logits.astype(o_ref.dtype)


def lstm_model_pallas(x, params, *, hidden_size):
    B, S, I = x.shape
    H = hidden_size
    layers = params["layers"]
    L = len(layers)
    O = params["wcls"].shape[1]
    O_pad = max(128, ((O + 127) // 128) * 128)    # lane-dense output width

    # time-major, flattened: row (t*B + b) == x[b, t, :]
    x_tm = jnp.transpose(x, (1, 0, 2)).reshape(S * B, I)

    # zero-pad classifier to a full lane tile (sliced back outside the kernel)
    wcls_pad = jnp.zeros((H, O_pad), jnp.float32).at[:, :O].set(params["wcls"])
    bcls_pad = jnp.zeros((1, O_pad), jnp.float32).at[:, :O].set(params["bcls"])

    flat_args = [x_tm]
    for lp in layers:
        # bf16 MXU operands (weights cast once in the wrapper); bias stays f32.
        flat_args += [lp["wih"].astype(jnp.bfloat16),
                      lp["whh"].astype(jnp.bfloat16),
                      lp["b"]]
    flat_args += [wcls_pad.astype(jnp.bfloat16), bcls_pad]

    # Advisory cost hint for the XLA scheduler around the custom call.
    flops = 0
    in_l = I
    for _ in range(L):
        flops += 2 * S * B * in_l * 4 * H         # input projection
        flops += 2 * S * B * H * 4 * H            # recurrent matmuls
        in_l = H
    flops += 2 * S * B * H * O_pad                # classifier
    transcendentals = 5 * S * B * H * L           # 3 sigmoid + 2 tanh per element/step
    bytes_accessed = sum(a.size * a.dtype.itemsize for a in flat_args) \
        + S * B * O_pad * 4
    cost = pl.CostEstimate(flops=flops, transcendentals=transcendentals,
                           bytes_accessed=bytes_accessed)

    kernel = functools.partial(lstm_kernel, B=B, S=S, H=H, num_layers=L)
    vmem = lambda: pl.BlockSpec(memory_space=pltpu.MemorySpace.VMEM)
    out = pl.pallas_call(
        kernel,
        out_shape=jax.ShapeDtypeStruct((S * B, O_pad), jnp.float32),
        in_specs=[vmem() for _ in flat_args],
        out_specs=vmem(),
        scratch_shapes=[pltpu.VMEM((S * B, 4 * H), jnp.float32),   # gates_x
                        pltpu.VMEM((S * B, H), jnp.float32)],      # hidden history
        cost_estimate=cost,
    )(*flat_args)
    out = out[:, :O]                                               # drop lane padding
    return out.reshape(S, B, O).transpose(1, 0, 2)                 # [B, S, O]


# ---------------- pure-JAX reference (matches kernel numerics: bf16 matmuls) ----
def lstm_model_ref(x, params, *, hidden_size):
    B, S, _ = x.shape
    H = hidden_size
    seq = x
    for lp in params["layers"]:
        wih = lp["wih"].astype(jnp.bfloat16)
        whh = lp["whh"].astype(jnp.bfloat16)
        b = lp["b"]

        def step(carry, x_t):
            h, c = carry
            g_all = (jnp.dot(x_t.astype(jnp.bfloat16), wih,
                             preferred_element_type=jnp.float32)
                     + jnp.dot(h.astype(jnp.bfloat16), whh,
                               preferred_element_type=jnp.float32) + b)
            i_g = jax.nn.sigmoid(g_all[:, :H])
            f_g = jax.nn.sigmoid(g_all[:, H:2 * H])
            g_g = jnp.tanh(g_all[:, 2 * H:3 * H])
            o_g = jax.nn.sigmoid(g_all[:, 3 * H:])
            c = f_g * c + i_g * g_g
            h = o_g * jnp.tanh(c)
            return (h, c), h

        h0 = jnp.zeros((B, H), jnp.float32)
        c0 = jnp.zeros((B, H), jnp.float32)
        _, hs = jax.lax.scan(step, (h0, c0), jnp.transpose(seq, (1, 0, 2)))
        seq = jnp.transpose(hs, (1, 0, 2))                         # [B, S, H]
    return (jnp.dot(seq.astype(jnp.bfloat16),
                    params["wcls"].astype(jnp.bfloat16),
                    preferred_element_type=jnp.float32) + params["bcls"])


# ---------------------------- parameter init --------------------------------
def init_params(key, input_size, hidden_size, num_layers, output_size):
    H = hidden_size
    keys = jax.random.split(key, 3 * num_layers + 2)

    def xavier(k, fan_in, fan_out):
        bound = math.sqrt(6.0 / (fan_in + fan_out))
        return jax.random.uniform(k, (fan_in, fan_out), jnp.float32, -bound, bound)

    kb = 1.0 / math.sqrt(H)
    layers, idx = [], 0
    for l in range(num_layers):
        in_l = input_size if l == 0 else H
        wih = xavier(keys[idx], in_l, 4 * H); idx += 1     # xavier, like the module
        whh = xavier(keys[idx], H, 4 * H); idx += 1
        # PyTorch has b_ih and b_hh; only their sum enters the forward pass.
        b = jax.random.uniform(keys[idx], (1, 4 * H), jnp.float32, -kb, kb); idx += 1
        layers.append({"wih": wih, "whh": whh, "b": b})
    wcls = jax.random.uniform(keys[idx], (H, output_size), jnp.float32, -kb, kb); idx += 1
    bcls = jax.random.uniform(keys[idx], (1, output_size), jnp.float32, -kb, kb)
    return {"layers": layers, "wcls": wcls, "bcls": bcls}


if __name__ == "__main__":
    # small shapes consistent with the module; batch=8 fills the sublane axis
    batch, seq_len = 8, 16
    input_size, hidden_size, output_size = 32, 64, 8
    num_layers = 1   # matches the module-level global in the reference script

    key = jax.random.PRNGKey(0)
    kx, kp = jax.random.split(key)
    x = jax.random.normal(kx, (batch, seq_len, input_size), jnp.float32)
    params = init_params(kp, input_size, hidden_size, num_layers, output_size)

    out = lstm_model_pallas(x, params, hidden_size=hidden_size)
    out = jax.block_until_ready(out)

    ref = lstm_model_ref(x, params, hidden_size=hidden_size)
    assert out.shape == (batch, seq_len, output_size)
    # bf16 MXU operands on both paths; loose-ish tolerance covers any residual
    # divergence in transcendental approximations across the 16-step recurrence.
    assert jnp.allclose(out, ref, atol=1e-2, rtol=1e-2), "mismatch vs JAX reference"

    print("KERNEL_OK")
</pallas_src>

<mosaic_0001>
module attributes {stable_mosaic.version = 11 : i64} {
  func.func @lstm_kernel(%arg0: memref<128x32xf32, #tpu.memory_space<vmem>>, %arg1: memref<32x256xbf16, #tpu.memory_space<vmem>>, %arg2: memref<64x256xbf16, #tpu.memory_space<vmem>>, %arg3: memref<1x256xf32, #tpu.memory_space<vmem>>, %arg4: memref<64x128xbf16, #tpu.memory_space<vmem>>, %arg5: memref<1x128xf32, #tpu.memory_space<vmem>>, %arg6: memref<128x128xf32, #tpu.memory_space<vmem>>, %arg7: memref<128x256xf32, #tpu.memory_space<vmem>>, %arg8: memref<128x64xf32, #tpu.memory_space<vmem>>) attributes {dimension_semantics = [], scalar_prefetch = 0 : i64, scratch_operands = 2 : i64, tpu.core_type = #tpu.core_type<tc>} {
    %c0 = arith.constant 0 : index
    %c0_0 = arith.constant 0 : index
    %0 = vector.load %arg1[%c0, %c0_0] : memref<32x256xbf16, #tpu.memory_space<vmem>>, vector<32x256xbf16>
    %c0_1 = arith.constant 0 : index
    %c0_2 = arith.constant 0 : index
    %1 = vector.load %arg2[%c0_1, %c0_2] : memref<64x256xbf16, #tpu.memory_space<vmem>>, vector<64x256xbf16>
    %c0_3 = arith.constant 0 : index
    %c0_4 = arith.constant 0 : index
    %2 = vector.load %arg3[%c0_3, %c0_4] : memref<1x256xf32, #tpu.memory_space<vmem>>, vector<1x256xf32>
    %c0_5 = arith.constant 0 : index
    %c0_6 = arith.constant 0 : index
    %3 = vector.load %arg0[%c0_5, %c0_6] : memref<128x32xf32, #tpu.memory_space<vmem>>, vector<128x32xf32>
    %4 = arith.truncf %3 : vector<128x32xf32> to vector<128x32xbf16>
    %cst = arith.constant dense<0.000000e+00> : vector<128x256xf32>
    %5 = tpu.matmul %4, %0, %cst {dimension_numbers = #tpu.dot_dimension_numbers<[1], [0], [0], [1], [0, 0, 1, 1], [], []>} : vector<128x32xbf16>, vector<32x256xbf16>, vector<128x256xf32> -> vector<128x256xf32>
    %6 = vector.broadcast %2 : vector<1x256xf32> to vector<128x256xf32>
    %7 = arith.addf %5, %6 : vector<128x256xf32>
    %c0_7 = arith.constant 0 : index
    %c0_8 = arith.constant 0 : index
    %8 = vector.load %arg7[%c0_7, %c0_8] : memref<128x256xf32, #tpu.memory_space<vmem>>, vector<128x256xf32>
    tpu.vector_store %arg7[%c0_7, %c0_8], %7 {strides = array<i32>} : memref<128x256xf32, #tpu.memory_space<vmem>>, vector<128x256xf32>,
    %cst_9 = arith.constant 0.000000e+00 : f32
    %9 = vector.broadcast %cst_9 : f32 to vector<8x64xf32>
    %cst_10 = arith.constant 0.000000e+00 : f32
    %10 = vector.broadcast %cst_10 : f32 to vector<8x64xf32>
    %c0_11 = arith.constant 0 : index
    %c0_12 = arith.constant 0 : index
    %11 = vector.load %arg7[%c0_11, %c0_12] : memref<128x256xf32, #tpu.memory_space<vmem>>, vector<8x256xf32>
    %12 = arith.truncf %9 : vector<8x64xf32> to vector<8x64xbf16>
    %cst_13 = arith.constant dense<0.000000e+00> : vector<8x256xf32>
    %13 = tpu.matmul %12, %1, %cst_13 {dimension_numbers = #tpu.dot_dimension_numbers<[1], [0], [0], [1], [0, 0, 1, 1], [], []>} : vector<8x64xbf16>, vector<64x256xbf16>, vector<8x256xf32> -> vector<8x256xf32>
    %14 = arith.addf %11, %13 : vector<8x256xf32>
    %15 = vector.extract_strided_slice %14 {offsets = [0, 0], sizes = [8, 64], strides = [1, 1]} : vector<8x256xf32> to vector<8x64xf32>
    %16 = arith.negf %15 : vector<8x64xf32>
    %17 = math.exp %16 : vector<8x64xf32>
    %cst_14 = arith.constant 1.000000e+00 : f32
    %18 = vector.broadcast %cst_14 : f32 to vector<8x64xf32>
    %19 = arith.addf %18, %17 : vector<8x64xf32>
    %20 = arith.divf %18, %19 : vector<8x64xf32>
    %21 = vector.extract_strided_slice %14 {offsets = [0, 64], sizes = [8, 64], strides = [1, 1]} : vector<8x256xf32> to vector<8x64xf32>
    %22 = arith.negf %21 : vector<8x64xf32>
    %23 = math.exp %22 : vector<8x64xf32>
    %cst_15 = arith.constant 1.000000e+00 : f32
    %24 = vector.broadcast %cst_15 : f32 to vector<8x64xf32>
    %25 = arith.addf %24, %23 : vector<8x64xf32>
    %26 = arith.divf %24, %25 : vector<8x64xf32>
    %27 = vector.extract_strided_slice %14 {offsets = [0, 128], sizes = [8, 64], strides = [1, 1]} : vector<8x256xf32> to vector<8x64xf32>
    %28 = math.tanh %27 : vector<8x64xf32>
    %29 = vector.extract_strided_slice %14 {offsets = [0, 192], sizes = [8, 64], strides = [1, 1]} : vector<8x256xf32> to vector<8x64xf32>
    %30 = arith.negf %29 : vector<8x64xf32>
    %31 = math.exp %30 : vector<8x64xf32>
    %cst_16 = arith.constant 1.000000e+00 : f32
    %32 = vector.broadcast %cst_16 : f32 to vector<8x64xf32>
    %33 = arith.addf %32, %31 : vector<8x64xf32>
    %34 = arith.divf %32, %33 : vector<8x64xf32>
    %35 = arith.mulf %26, %10 : vector<8x64xf32>
    %36 = arith.mulf %20, %28 : vector<8x64xf32>
    %37 = arith.addf %35, %36 : vector<8x64xf32>
    %38 = math.tanh %37 : vector<8x64xf32>
    %39 = arith.mulf %34, %38 : vector<8x64xf32>
    %c0_17 = arith.constant 0 : index
    %c0_18 = arith.constant 0 : index
    %40 = vector.load %arg8[%c0_17, %c0_18] : memref<128x64xf32, #tpu.memory_space<vmem>>, vector<8x64xf32>
    tpu.vector_store %arg8[%c0_17, %c0_18], %39 {strides = array<i32>} : memref<128x64xf32, #tpu.memory_space<vmem>>, vector<8x64xf32>,
    %c8 = arith.constant 8 : index
    %c0_19 = arith.constant 0 : index
    %41 = vector.load %arg7[%c8, %c0_19] : memref<128x256xf32, #tpu.memory_space<vmem>>, vector<8x256xf32>
    %42 = arith.truncf %39 : vector<8x64xf32> to vector<8x64xbf16>
    %cst_20 = arith.constant dense<0.000000e+00> : vector<8x256xf32>
    %43 = tpu.matmul %42, %1, %cst_20 {dimension_numbers = #tpu.dot_dimension_numbers<[1], [0], [0], [1], [0, 0, 1, 1], [], []>} : vector<8x64xbf16>, vector<64x256xbf16>, vector<8x256xf32> -> vector<8x256xf32>
    %44 = arith.addf %41, %43 : vector<8x256xf32>
    %45 = vector.extract_strided_slice %44 {offsets = [0, 0], sizes = [8, 64], strides = [1, 1]} : vector<8x256xf32> to vector<8x64xf32>
    %46 = arith.negf %45 : vector<8x64xf32>
    %47 = math.exp %46 : vector<8x64xf32>
    %cst_21 = arith.constant 1.000000e+00 : f32
    %48 = vector.broadcast %cst_21 : f32 to vector<8x64xf32>
    %49 = arith.addf %48, %47 : vector<8x64xf32>
    %50 = arith.divf %48, %49 : vector<8x64xf32>
    %51 = vector.extract_strided_slice %44 {offsets = [0, 64], sizes = [8, 64], strides = [1, 1]} : vector<8x256xf32> to vector<8x64xf32>
    %52 = arith.negf %51 : vector<8x64xf32>
    %53 = math.exp %52 : vector<8x64xf32>
    %cst_22 = arith.constant 1.000000e+00 : f32
    %54 = vector.broadcast %cst_22 : f32 to vector<8x64xf32>
    %55 = arith.addf %54, %53 : vector<8x64xf32>
    %56 = arith.divf %54, %55 : vector<8x64xf32>
    %57 = vector.extract_strided_slice %44 {offsets = [0, 128], sizes = [8, 64], strides = [1, 1]} : vector<8x256xf32> to vector<8x64xf32>
    %58 = math.tanh %57 : vector<8x64xf32>
    %59 = vector.extract_strided_slice %44 {offsets = [0, 192], sizes = [8, 64], strides = [1, 1]} : vector<8x256xf32> to vector<8x64xf32>
    %60 = arith.negf %59 : vector<8x64xf32>
    %61 = math.exp %60 : vector<8x64xf32>
    %cst_23 = arith.constant 1.000000e+00 : f32
    %62 = vector.broadcast %cst_23 : f32 to vector<8x64xf32>
    %63 = arith.addf %62, %61 : vector<8x64xf32>
    %64 = arith.divf %62, %63 : vector<8x64xf32>
    %65 = arith.mulf %56, %37 : vector<8x64xf32>
    %66 = arith.mulf %50, %58 : vector<8x64xf32>
    %67 = arith.addf %65, %66 : vector<8x64xf32>
    %68 = math.tanh %67 : vector<8x64xf32>
    %69 = arith.mulf %64, %68 : vector<8x64xf32>
    %c8_24 = arith.constant 8 : index
    %c0_25 = arith.constant 0 : index
    %70 = vector.load %arg8[%c8_24, %c0_25] : memref<128x64xf32, #tpu.memory_space<vmem>>, vector<8x64xf32>
    tpu.vector_store %arg8[%c8_24, %c0_25], %69 {strides = array<i32>} : memref<128x64xf32, #tpu.memory_space<vmem>>, vector<8x64xf32>,
    %c16 = arith.constant 16 : index
    %c0_26 = arith.constant 0 : index
    %71 = vector.load %arg7[%c16, %c0_26] : memref<128x256xf32, #tpu.memory_space<vmem>>, vector<8x256xf32>
    %72 = arith.truncf %69 : vector<8x64xf32> to vector<8x64xbf16>
    %cst_27 = arith.constant dense<0.000000e+00> : vector<8x256xf32>
    %73 = tpu.matmul %72, %1, %cst_27 {dimension_numbers = #tpu.dot_dimension_numbers<[1], [0], [0], [1], [0, 0, 1, 1], [], []>} : vector<8x64xbf16>, vector<64x256xbf16>, vector<8x256xf32> -> vector<8x256xf32>
    %74 = arith.addf %71, %73 : vector<8x256xf32>
    %75 = vector.extract_strided_slice %74 {offsets = [0, 0], sizes = [8, 64], strides = [1, 1]} : vector<8x256xf32> to vector<8x64xf32>
    %76 = arith.negf %75 : vector<8x64xf32>
    %77 = math.exp %76 : vector<8x64xf32>
    %cst_28 = arith.constant 1.000000e+00 : f32
    %78 = vector.broadcast %cst_28 : f32 to vector<8x64xf32>
    %79 = arith.addf %78, %77 : vector<8x64xf32>
    %80 = arith.divf %78, %79 : vector<8x64xf32>
    %81 = vector.extract_strided_slice %74 {offsets = [0, 64], sizes = [8, 64], strides = [1, 1]} : vector<8x256xf32> to vector<8x64xf32>
    %82 = arith.negf %81 : vector<8x64xf32>
    %83 = math.exp %82 : vector<8x64xf32>
    %cst_29 = arith.constant 1.000000e+00 : f32
    %84 = vector.broadcast %cst_29 : f32 to vector<8x64xf32>
    %85 = arith.addf %84, %83 : vector<8x64xf32>
    %86 = arith.divf %84, %85 : vector<8x64xf32>
    %87 = vector.extract_strided_slice %74 {offsets = [0, 128], sizes = [8, 64], strides = [1, 1]} : vector<8x256xf32> to vector<8x64xf32>
    %88 = math.tanh %87 : vector<8x64xf32>
    %89 = vector.extract_strided_slice %74 {offsets = [0, 192], sizes = [8, 64], strides = [1, 1]} : vector<8x256xf32> to vector<8x64xf32>
    %90 = arith.negf %89 : vector<8x64xf32>
    %91 = math.exp %90 : vector<8x64xf32>
    %cst_30 = arith.constant 1.000000e+00 : f32
    %92 = vector.broadcast %cst_30 : f32 to vector<8x64xf32>
    %93 = arith.addf %92, %91 : vector<8x64xf32>
    %94 = arith.divf %92, %93 : vector<8x64xf32>
    %95 = arith.mulf %86, %67 : vector<8x64xf32>
    %96 = arith.mulf %80, %88 : vector<8x64xf32>
    %97 = arith.addf %95, %96 : vector<8x64xf32>
    %98 = math.tanh %97 : vector<8x64xf32>
    %99 = arith.mulf %94, %98 : vector<8x64xf32>
    %c16_31 = arith.constant 16 : index
    %c0_32 = arith.constant 0 : index
    %100 = vector.load %arg8[%c16_31, %c0_32] : memref<128x64xf32, #tpu.memory_space<vmem>>, vector<8x64xf32>
    tpu.vector_store %arg8[%c16_31, %c0_32], %99 {strides = array<i32>} : memref<128x64xf32, #tpu.memory_space<vmem>>, vector<8x64xf32>,
    %c24 = arith.constant 24 : index
    %c0_33 = arith.constant 0 : index
    %101 = vector.load %arg7[%c24, %c0_33] : memref<128x256xf32, #tpu.memory_space<vmem>>, vector<8x256xf32>
    %102 = arith.truncf %99 : vector<8x64xf32> to vector<8x64xbf16>
    %cst_34 = arith.constant dense<0.000000e+00> : vector<8x256xf32>
    %103 = tpu.matmul %102, %1, %cst_34 {dimension_numbers = #tpu.dot_dimension_numbers<[1], [0], [0], [1], [0, 0, 1, 1], [], []>} : vector<8x64xbf16>, vector<64x256xbf16>, vector<8x256xf32> -> vector<8x256xf32>
    %104 = arith.addf %101, %103 : vector<8x256xf32>
    %105 = vector.extract_strided_slice %104 {offsets = [0, 0], sizes = [8, 64], strides = [1, 1]} : vector<8x256xf32> to vector<8x64xf32>
    %106 = arith.negf %105 : vector<8x64xf32>
    %107 = math.exp %106 : vector<8x64xf32>
    %cst_35 = arith.constant 1.000000e+00 : f32
    %108 = vector.broadcast %cst_35 : f32 to vector<8x64xf32>
    %109 = arith.addf %108, %107 : vector<8x64xf32>
    %110 = arith.divf %108, %109 : vector<8x64xf32>
    %111 = vector.extract_strided_slice %104 {offsets = [0, 64], sizes = [8, 64], strides = [1, 1]} : vector<8x256xf32> to vector<8x64xf32>
    %112 = arith.negf %111 : vector<8x64xf32>
    %113 = math.exp %112 : vector<8x64xf32>
    %cst_36 = arith.constant 1.000000e+00 : f32
    %114 = vector.broadcast %cst_36 : f32 to vector<8x64xf32>
    %115 = arith.addf %114, %113 : vector<8x64xf32>
    %116 = arith.divf %114, %115 : vector<8x64xf32>
    %117 = vector.extract_strided_slice %104 {offsets = [0, 128], sizes = [8, 64], strides = [1, 1]} : vector<8x256xf32> to vector<8x64xf32>
    %118 = math.tanh %117 : vector<8x64xf32>
    %119 = vector.extract_strided_slice %104 {offsets = [0, 192], sizes = [8, 64], strides = [1, 1]} : vector<8x256xf32> to vector<8x64xf32>
    %120 = arith.negf %119 : vector<8x64xf32>
    %121 = math.exp %120 : vector<8x64xf32>
    %cst_37 = arith.constant 1.000000e+00 : f32
    %122 = vector.broadcast %cst_37 : f32 to vector<8x64xf32>
    %123 = arith.addf %122, %121 : vector<8x64xf32>
    %124 = arith.divf %122, %123 : vector<8x64xf32>
    %125 = arith.mulf %116, %97 : vector<8x64xf32>
    %126 = arith.mulf %110, %118 : vector<8x64xf32>
    %127 = arith.addf %125, %126 : vector<8x64xf32>
    %128 = math.tanh %127 : vector<8x64xf32>
    %129 = arith.mulf %124, %128 : vector<8x64xf32>
    %c24_38 = arith.constant 24 : index
    %c0_39 = arith.constant 0 : index
    %130 = vector.load %arg8[%c24_38, %c0_39] : memref<128x64xf32, #tpu.memory_space<vmem>>, vector<8x64xf32>
    tpu.vector_store %arg8[%c24_38, %c0_39], %129 {strides = array<i32>} : memref<128x64xf32, #tpu.memory_space<vmem>>, vector<8x64xf32>,
    %c32 = arith.constant 32 : index
    %c0_40 = arith.constant 0 : index
    %131 = vector.load %arg7[%c32, %c0_40] : memref<128x256xf32, #tpu.memory_space<vmem>>, vector<8x256xf32>
    %132 = arith.truncf %129 : vector<8x64xf32> to vector<8x64xbf16>
    %cst_41 = arith.constant dense<0.000000e+00> : vector<8x256xf32>
    %133 = tpu.matmul %132, %1, %cst_41 {dimension_numbers = #tpu.dot_dimension_numbers<[1], [0], [0], [1], [0, 0, 1, 1], [], []>} : vector<8x64xbf16>, vector<64x256xbf16>, vector<8x256xf32> -> vector<8x256xf32>
    %134 = arith.addf %131, %133 : vector<8x256xf32>
    %135 = vector.extract_strided_slice %134 {offsets = [0, 0], sizes = [8, 64], strides = [1, 1]} : vector<8x256xf32> to vector<8x64xf32>
    %136 = arith.negf %135 : vector<8x64xf32>
    %137 = math.exp %136 : vector<8x64xf32>
    %cst_42 = arith.constant 1.000000e+00 : f32
    %138 = vector.broadcast %cst_42 : f32 to vector<8x64xf32>
    %139 = arith.addf %138, %137 : vector<8x64xf32>
    %140 = arith.divf %138, %139 : vector<8x64xf32>
    %141 = vector.extract_strided_slice %134 {offsets = [0, 64], sizes = [8, 64], strides = [1, 1]} : vector<8x256xf32> to vector<8x64xf32>
    %142 = arith.negf %141 : vector<8x64xf32>
    %143 = math.exp %142 : vector<8x64xf32>
    %cst_43 = arith.constant 1.000000e+00 : f32
    %144 = vector.broadcast %cst_43 : f32 to vector<8x64xf32>
    %145 = arith.addf %144, %143 : vector<8x64xf32>
    %146 = arith.divf %144, %145 : vector<8x64xf32>
    %147 = vector.extract_strided_slice %134 {offsets = [0, 128], sizes = [8, 64], strides = [1, 1]} : vector<8x256xf32> to vector<8x64xf32>
    %148 = math.tanh %147 : vector<8x64xf32>
    %149 = vector.extract_strided_slice %134 {offsets = [0, 192], sizes = [8, 64], strides = [1, 1]} : vector<8x256xf32> to vector<8x64xf32>
    %150 = arith.negf %149 : vector<8x64xf32>
    %151 = math.exp %150 : vector<8x64xf32>
    %cst_44 = arith.constant 1.000000e+00 : f32
    %152 = vector.broadcast %cst_44 : f32 to vector<8x64xf32>
    %153 = arith.addf %152, %151 : vector<8x64xf32>
    %154 = arith.divf %152, %153 : vector<8x64xf32>
    %155 = arith.mulf %146, %127 : vector<8x64xf32>
    %156 = arith.mulf %140, %148 : vector<8x64xf32>
    %157 = arith.addf %155, %156 : vector<8x64xf32>
    %158 = math.tanh %157 : vector<8x64xf32>
    %159 = arith.mulf %154, %158 : vector<8x64xf32>
    %c32_45 = arith.constant 32 : index
    %c0_46 = arith.constant 0 : index
    %160 = vector.load %arg8[%c32_45, %c0_46] : memref<128x64xf32, #tpu.memory_space<vmem>>, vector<8x64xf32>
    tpu.vector_store %arg8[%c32_45, %c0_46], %159 {strides = array<i32>} : memref<128x64xf32, #tpu.memory_space<vmem>>, vector<8x64xf32>,
    %c40 = arith.constant 40 : index
    %c0_47 = arith.constant 0 : index
    %161 = vector.load %arg7[%c40, %c0_47] : memref<128x256xf32, #tpu.memory_space<vmem>>, vector<8x256xf32>
    %162 = arith.truncf %159 : vector<8x64xf32> to vector<8x64xbf16>
    %cst_48 = arith.constant dense<0.000000e+00> : vector<8x256xf32>
    %163 = tpu.matmul %162, %1, %cst_48 {dimension_numbers = #tpu.dot_dimension_numbers<[1], [0], [0], [1], [0, 0, 1, 1], [], []>} : vector<8x64xbf16>, vector<64x256xbf16>, vector<8x256xf32> -> vector<8x256xf32>
    %164 = arith.addf %161, %163 : vector<8x256xf32>
    %165 = vector.extract_strided_slice %164 {offsets = [0, 0], sizes = [8, 64], strides = [1, 1]} : vector<8x256xf32> to vector<8x64xf32>
    %166 = arith.negf %165 : vector<8x64xf32>
    %167 = math.exp %166 : vector<8x64xf32>
    %cst_49 = arith.constant 1.000000e+00 : f32
    %168 = vector.broadcast %cst_49 : f32 to vector<8x64xf32>
    %169 = arith.addf %168, %167 : vector<8x64xf32>
    %170 = arith.divf %168, %169 : vector<8x64xf32>
    %171 = vector.extract_strided_slice %164 {offsets = [0, 64], sizes = [8, 64], strides = [1, 1]} : vector<8x256xf32> to vector<8x64xf32>
    %172 = arith.negf %171 : vector<8x64xf32>
    %173 = math.exp %172 : vector<8x64xf32>
    %cst_50 = arith.constant 1.000000e+00 : f32
    %174 = vector.broadcast %cst_50 : f32 to vector<8x64xf32>
    %175 = arith.addf %174, %173 : vector<8x64xf32>
    %176 = arith.divf %174, %175 : vector<8x64xf32>
    %177 = vector.extract_strided_slice %164 {offsets = [0, 128], sizes = [8, 64], strides = [1, 1]} : vector<8x256xf32> to vector<8x64xf32>
    %178 = math.tanh %177 : vector<8x64xf32>
    %179 = vector.extract_strided_slice %164 {offsets = [0, 192], sizes = [8, 64], strides = [1, 1]} : vector<8x256xf32> to vector<8x64xf32>
    %180 = arith.negf %179 : vector<8x64xf32>
    %181 = math.exp %180 : vector<8x64xf32>
    %cst_51 = arith.constant 1.000000e+00 : f32
    %182 = vector.broadcast %cst_51 : f32 to vector<8x64xf32>
    %183 = arith.addf %182, %181 : vector<8x64xf32>
    %184 = arith.divf %182, %183 : vector<8x64xf32>
    %185 = arith.mulf %176, %157 : vector<8x64xf32>
    %186 = arith.mulf %170, %178 : vector<8x64xf32>
    %187 = arith.addf %185, %186 : vector<8x64xf32>
    %188 = math.tanh %187 : vector<8x64xf32>
    %189 = arith.mulf %184, %188 : vector<8x64xf32>
    %c40_52 = arith.constant 40 : index
    %c0_53 = arith.constant 0 : index
    %190 = vector.load %arg8[%c40_52, %c0_53] : memref<128x64xf32, #tpu.memory_space<vmem>>, vector<8x64xf32>
    tpu.vector_store %arg8[%c40_52, %c0_53], %189 {strides = array<i32>} : memref<128x64xf32, #tpu.memory_space<vmem>>, vector<8x64xf32>,
    %c48 = arith.constant 48 : index
    %c0_54 = arith.constant 0 : index
    %191 = vector.load %arg7[%c48, %c0_54] : memref<128x256xf32, #tpu.memory_space<vmem>>, vector<8x256xf32>
    %192 = arith.truncf %189 : vector<8x64xf32> to vector<8x64xbf16>
    %cst_55 = arith.constant dense<0.000000e+00> : vector<8x256xf32>
    %193 = tpu.matmul %192, %1, %cst_55 {dimension_numbers = #tpu.dot_dimension_numbers<[1], [0], [0], [1], [0, 0, 1, 1], [], []>} : vector<8x64xbf16>, vector<64x256xbf16>, vector<8x256xf32> -> vector<8x256xf32>
    %194 = arith.addf %191, %193 : vector<8x256xf32>
    %195 = vector.extract_strided_slice %194 {offsets = [0, 0], sizes = [8, 64], strides = [1, 1]} : vector<8x256xf32> to vector<8x64xf32>
    %196 = arith.negf %195 : vector<8x64xf32>
    %197 = math.exp %196 : vector<8x64xf32>
    %cst_56 = arith.constant 1.000000e+00 : f32
    %198 = vector.broadcast %cst_56 : f32 to vector<8x64xf32>
    %199 = arith.addf %198, %197 : vector<8x64xf32>
    %200 = arith.divf %198, %199 : vector<8x64xf32>
    %201 = vector.extract_strided_slice %194 {offsets = [0, 64], sizes = [8, 64], strides = [1, 1]} : vector<8x256xf32> to vector<8x64xf32>
    %202 = arith.negf %201 : vector<8x64xf32>
    %203 = math.exp %202 : vector<8x64xf32>
    %cst_57 = arith.constant 1.000000e+00 : f32
    %204 = vector.broadcast %cst_57 : f32 to vector<8x64xf32>
    %205 = arith.addf %204, %203 : vector<8x64xf32>
    %206 = arith.divf %204, %205 : vector<8x64xf32>
    %207 = vector.extract_strided_slice %194 {offsets = [0, 128], sizes = [8, 64], strides = [1, 1]} : vector<8x256xf32> to vector<8x64xf32>
    %208 = math.tanh %207 : vector<8x64xf32>
    %209 = vector.extract_strided_slice %194 {offsets = [0, 192], sizes = [8, 64], strides = [1, 1]} : vector<8x256xf32> to vector<8x64xf32>
    %210 = arith.negf %209 : vector<8x64xf32>
    %211 = math.exp %210 : vector<8x64xf32>
    %cst_58 = arith.constant 1.000000e+00 : f32
    %212 = vector.broadcast %cst_58 : f32 to vector<8x64xf32>
    %213 = arith.addf %212, %211 : vector<8x64xf32>
    %214 = arith.divf %212, %213 : vector<8x64xf32>
    %215 = arith.mulf %206, %187 : vector<8x64xf32>
    %216 = arith.mulf %200, %208 : vector<8x64xf32>
    %217 = arith.addf %215, %216 : vector<8x64xf32>
    %218 = math.tanh %217 : vector<8x64xf32>
    %219 = arith.mulf %214, %218 : vector<8x64xf32>
    %c48_59 = arith.constant 48 : index
    %c0_60 = arith.constant 0 : index
    %220 = vector.load %arg8[%c48_59, %c0_60] : memref<128x64xf32, #tpu.memory_space<vmem>>, vector<8x64xf32>
    tpu.vector_store %arg8[%c48_59, %c0_60], %219 {strides = array<i32>} : memref<128x64xf32, #tpu.memory_space<vmem>>, vector<8x64xf32>,
    %c56 = arith.constant 56 : index
    %c0_61 = arith.constant 0 : index
    %221 = vector.load %arg7[%c56, %c0_61] : memref<128x256xf32, #tpu.memory_space<vmem>>, vector<8x256xf32>
    %222 = arith.truncf %219 : vector<8x64xf32> to vector<8x64xbf16>
    %cst_62 = arith.constant dense<0.000000e+00> : vector<8x256xf32>
    %223 = tpu.matmul %222, %1, %cst_62 {dimension_numbers = #tpu.dot_dimension_numbers<[1], [0], [0], [1], [0, 0, 1, 1], [], []>} : vector<8x64xbf16>, vector<64x256xbf16>, vector<8x256xf32> -> vector<8x256xf32>
    %224 = arith.addf %221, %223 : vector<8x256xf32>
    %225 = vector.extract_strided_slice %224 {offsets = [0, 0], sizes = [8, 64], strides = [1, 1]} : vector<8x256xf32> to vector<8x64xf32>
    %226 = arith.negf %225 : vector<8x64xf32>
    %227 = math.exp %226 : vector<8x64xf32>
    %cst_63 = arith.constant 1.000000e+00 : f32
    %228 = vector.broadcast %cst_63 : f32 to vector<8x64xf32>
    %229 = arith.addf %228, %227 : vector<8x64xf32>
    %230 = arith.divf %228, %229 : vector<8x64xf32>
    %231 = vector.extract_strided_slice %224 {offsets = [0, 64], sizes = [8, 64], strides = [1, 1]} : vector<8x256xf32> to vector<8x64xf32>
    %232 = arith.negf %231 : vector<8x64xf32>
    %233 = math.exp %232 : vector<8x64xf32>
    %cst_64 = arith.constant 1.000000e+00 : f32
    %234 = vector.broadcast %cst_64 : f32 to vector<8x64xf32>
    %235 = arith.addf %234, %233 : vector<8x64xf32>
    %236 = arith.divf %234, %235 : vector<8x64xf32>
    %237 = vector.extract_strided_slice %224 {offsets = [0, 128], sizes = [8, 64], strides = [1, 1]} : vector<8x256xf32> to vector<8x64xf32>
    %238 = math.tanh %237 : vector<8x64xf32>
    %239 = vector.extract_strided_slice %224 {offsets = [0, 192], sizes = [8, 64], strides = [1, 1]} : vector<8x256xf32> to vector<8x64xf32>
    %240 = arith.negf %239 : vector<8x64xf32>
    %241 = math.exp %240 : vector<8x64xf32>
    %cst_65 = arith.constant 1.000000e+00 : f32
    %242 = vector.broadcast %cst_65 : f32 to vector<8x64xf32>
    %243 = arith.addf %242, %241 : vector<8x64xf32>
    %244 = arith.divf %242, %243 : vector<8x64xf32>
    %245 = arith.mulf %236, %217 : vector<8x64xf32>
    %246 = arith.mulf %230, %238 : vector<8x64xf32>
    %247 = arith.addf %245, %246 : vector<8x64xf32>
    %248 = math.tanh %247 : vector<8x64xf32>
    %249 = arith.mulf %244, %248 : vector<8x64xf32>
    %c56_66 = arith.constant 56 : index
    %c0_67 = arith.constant 0 : index
    %250 = vector.load %arg8[%c56_66, %c0_67] : memref<128x64xf32, #tpu.memory_space<vmem>>, vector<8x64xf32>
    tpu.vector_store %arg8[%c56_66, %c0_67], %249 {strides = array<i32>} : memref<128x64xf32, #tpu.memory_space<vmem>>, vector<8x64xf32>,
    %c64 = arith.constant 64 : index
    %c0_68 = arith.constant 0 : index
    %251 = vector.load %arg7[%c64, %c0_68] : memref<128x256xf32, #tpu.memory_space<vmem>>, vector<8x256xf32>
    %252 = arith.truncf %249 : vector<8x64xf32> to vector<8x64xbf16>
    %cst_69 = arith.constant dense<0.000000e+00> : vector<8x256xf32>
    %253 = tpu.matmul %252, %1, %cst_69 {dimension_numbers = #tpu.dot_dimension_numbers<[1], [0], [0], [1], [0, 0, 1, 1], [], []>} : vector<8x64xbf16>, vector<64x256xbf16>, vector<8x256xf32> -> vector<8x256xf32>
    %254 = arith.addf %251, %253 : vector<8x256xf32>
    %255 = vector.extract_strided_slice %254 {offsets = [0, 0], sizes = [8, 64], strides = [1, 1]} : vector<8x256xf32> to vector<8x64xf32>
    %256 = arith.negf %255 : vector<8x64xf32>
    %257 = math.exp %256 : vector<8x64xf32>
    %cst_70 = arith.constant 1.000000e+00 : f32
    %258 = vector.broadcast %cst_70 : f32 to vector<8x64xf32>
    %259 = arith.addf %258, %257 : vector<8x64xf32>
    %260 = arith.divf %258, %259 : vector<8x64xf32>
    %261 = vector.extract_strided_slice %254 {offsets = [0, 64], sizes = [8, 64], strides = [1, 1]} : vector<8x256xf32> to vector<8x64xf32>
    %262 = arith.negf %261 : vector<8x64xf32>
    %263 = math.exp %262 : vector<8x64xf32>
    %cst_71 = arith.constant 1.000000e+00 : f32
    %264 = vector.broadcast %cst_71 : f32 to vector<8x64xf32>
    %265 = arith.addf %264, %263 : vector<8x64xf32>
    %266 = arith.divf %264, %265 : vector<8x64xf32>
    %267 = vector.extract_strided_slice %254 {offsets = [0, 128], sizes = [8, 64], strides = [1, 1]} : vector<8x256xf32> to vector<8x64xf32>
    %268 = math.tanh %267 : vector<8x64xf32>
    %269 = vector.extract_strided_slice %254 {offsets = [0, 192], sizes = [8, 64], strides = [1, 1]} : vector<8x256xf32> to vector<8x64xf32>
    %270 = arith.negf %269 : vector<8x64xf32>
    %271 = math.exp %270 : vector<8x64xf32>
    %cst_72 = arith.constant 1.000000e+00 : f32
    %272 = vector.broadcast %cst_72 : f32 to vector<8x64xf32>
    %273 = arith.addf %272, %271 : vector<8x64xf32>
    %274 = arith.divf %272, %273 : vector<8x64xf32>
    %275 = arith.mulf %266, %247 : vector<8x64xf32>
    %276 = arith.mulf %260, %268 : vector<8x64xf32>
    %277 = arith.addf %275, %276 : vector<8x64xf32>
    %278 = math.tanh %277 : vector<8x64xf32>
    %279 = arith.mulf %274, %278 : vector<8x64xf32>
    %c64_73 = arith.constant 64 : index
    %c0_74 = arith.constant 0 : index
    %280 = vector.load %arg8[%c64_73, %c0_74] : memref<128x64xf32, #tpu.memory_space<vmem>>, vector<8x64xf32>
    tpu.vector_store %arg8[%c64_73, %c0_74], %279 {strides = array<i32>} : memref<128x64xf32, #tpu.memory_space<vmem>>, vector<8x64xf32>,
    %c72 = arith.constant 72 : index
    %c0_75 = arith.constant 0 : index
    %281 = vector.load %arg7[%c72, %c0_75] : memref<128x256xf32, #tpu.memory_space<vmem>>, vector<8x256xf32>
    %282 = arith.truncf %279 : vector<8x64xf32> to vector<8x64xbf16>
    %cst_76 = arith.constant dense<0.000000e+00> : vector<8x256xf32>
    %283 = tpu.matmul %282, %1, %cst_76 {dimension_numbers = #tpu.dot_dimension_numbers<[1], [0], [0], [1], [0, 0, 1, 1], [], []>} : vector<8x64xbf16>, vector<64x256xbf16>, vector<8x256xf32> -> vector<8x256xf32>
    %284 = arith.addf %281, %283 : vector<8x256xf32>
    %285 = vector.extract_strided_slice %284 {offsets = [0, 0], sizes = [8, 64], strides = [1, 1]} : vector<8x256xf32> to vector<8x64xf32>
    %286 = arith.negf %285 : vector<8x64xf32>
    %287 = math.exp %286 : vector<8x64xf32>
    %cst_77 = arith.constant 1.000000e+00 : f32
    %288 = vector.broadcast %cst_77 : f32 to vector<8x64xf32>
    %289 = arith.addf %288, %287 : vector<8x64xf32>
    %290 = arith.divf %288, %289 : vector<8x64xf32>
    %291 = vector.extract_strided_slice %284 {offsets = [0, 64], sizes = [8, 64], strides = [1, 1]} : vector<8x256xf32> to vector<8x64xf32>
    %292 = arith.negf %291 : vector<8x64xf32>
    %293 = math.exp %292 : vector<8x64xf32>
    %cst_78 = arith.constant 1.000000e+00 : f32
    %294 = vector.broadcast %cst_78 : f32 to vector<8x64xf32>
    %295 = arith.addf %294, %293 : vector<8x64xf32>
    %296 = arith.divf %294, %295 : vector<8x64xf32>
    %297 = vector.extract_strided_slice %284 {offsets = [0, 128], sizes = [8, 64], strides = [1, 1]} : vector<8x256xf32> to vector<8x64xf32>
    %298 = math.tanh %297 : vector<8x64xf32>
    %299 = vector.extract_strided_slice %284 {offsets = [0, 192], sizes = [8, 64], strides = [1, 1]} : vector<8x256xf32> to vector<8x64xf32>
    %300 = arith.negf %299 : vector<8x64xf32>
    %301 = math.exp %300 : vector<8x64xf32>
    %cst_79 = arith.constant 1.000000e+00 : f32
    %302 = vector.broadcast %cst_79 : f32 to vector<8x64xf32>
    %303 = arith.addf %302, %301 : vector<8x64xf32>
    %304 = arith.divf %302, %303 : vector<8x64xf32>
    %305 = arith.mulf %296, %277 : vector<8x64xf32>
    %306 = arith.mulf %290, %298 : vector<8x64xf32>
    %307 = arith.addf %305, %306 : vector<8x64xf32>
    %308 = math.tanh %307 : vector<8x64xf32>
    %309 = arith.mulf %304, %308 : vector<8x64xf32>
    %c72_80 = arith.constant 72 : index
    %c0_81 = arith.constant 0 : index
    %310 = vector.load %arg8[%c72_80, %c0_81] : memref<128x64xf32, #tpu.memory_space<vmem>>, vector<8x64xf32>
    tpu.vector_store %arg8[%c72_80, %c0_81], %309 {strides = array<i32>} : memref<128x64xf32, #tpu.memory_space<vmem>>, vector<8x64xf32>,
    %c80 = arith.constant 80 : index
    %c0_82 = arith.constant 0 : index
    %311 = vector.load %arg7[%c80, %c0_82] : memref<128x256xf32, #tpu.memory_space<vmem>>, vector<8x256xf32>
    %312 = arith.truncf %309 : vector<8x64xf32> to vector<8x64xbf16>
    %cst_83 = arith.constant dense<0.000000e+00> : vector<8x256xf32>
    %313 = tpu.matmul %312, %1, %cst_83 {dimension_numbers = #tpu.dot_dimension_numbers<[1], [0], [0], [1], [0, 0, 1, 1], [], []>} : vector<8x64xbf16>, vector<64x256xbf16>, vector<8x256xf32> -> vector<8x256xf32>
    %314 = arith.addf %311, %313 : vector<8x256xf32>
    %315 = vector.extract_strided_slice %314 {offsets = [0, 0], sizes = [8, 64], strides = [1, 1]} : vector<8x256xf32> to vector<8x64xf32>
    %316 = arith.negf %315 : vector<8x64xf32>
    %317 = math.exp %316 : vector<8x64xf32>
    %cst_84 = arith.constant 1.000000e+00 : f32
    %318 = vector.broadcast %cst_84 : f32 to vector<8x64xf32>
    %319 = arith.addf %318, %317 : vector<8x64xf32>
    %320 = arith.divf %318, %319 : vector<8x64xf32>
    %321 = vector.extract_strided_slice %314 {offsets = [0, 64], sizes = [8, 64], strides = [1, 1]} : vector<8x256xf32> to vector<8x64xf32>
    %322 = arith.negf %321 : vector<8x64xf32>
    %323 = math.exp %322 : vector<8x64xf32>
    %cst_85 = arith.constant 1.000000e+00 : f32
    %324 = vector.broadcast %cst_85 : f32 to vector<8x64xf32>
    %325 = arith.addf %324, %323 : vector<8x64xf32>
    %326 = arith.divf %324, %325 : vector<8x64xf32>
    %327 = vector.extract_strided_slice %314 {offsets = [0, 128], sizes = [8, 64], strides = [1, 1]} : vector<8x256xf32> to vector<8x64xf32>
    %328 = math.tanh %327 : vector<8x64xf32>
    %329 = vector.extract_strided_slice %314 {offsets = [0, 192], sizes = [8, 64], strides = [1, 1]} : vector<8x256xf32> to vector<8x64xf32>
    %330 = arith.negf %329 : vector<8x64xf32>
    %331 = math.exp %330 : vector<8x64xf32>
    %cst_86 = arith.constant 1.000000e+00 : f32
    %332 = vector.broadcast %cst_86 : f32 to vector<8x64xf32>
    %333 = arith.addf %332, %331 : vector<8x64xf32>
    %334 = arith.divf %332, %333 : vector<8x64xf32>
    %335 = arith.mulf %326, %307 : vector<8x64xf32>
    %336 = arith.mulf %320, %328 : vector<8x64xf32>
    %337 = arith.addf %335, %336 : vector<8x64xf32>
    %338 = math.tanh %337 : vector<8x64xf32>
    %339 = arith.mulf %334, %338 : vector<8x64xf32>
    %c80_87 = arith.constant 80 : index
    %c0_88 = arith.constant 0 : index
    %340 = vector.load %arg8[%c80_87, %c0_88] : memref<128x64xf32, #tpu.memory_space<vmem>>, vector<8x64xf32>
    tpu.vector_store %arg8[%c80_87, %c0_88], %339 {strides = array<i32>} : memref<128x64xf32, #tpu.memory_space<vmem>>, vector<8x64xf32>,
    %c88 = arith.constant 88 : index
    %c0_89 = arith.constant 0 : index
    %341 = vector.load %arg7[%c88, %c0_89] : memref<128x256xf32, #tpu.memory_space<vmem>>, vector<8x256xf32>
    %342 = arith.truncf %339 : vector<8x64xf32> to vector<8x64xbf16>
    %cst_90 = arith.constant dense<0.000000e+00> : vector<8x256xf32>
    %343 = tpu.matmul %342, %1, %cst_90 {dimension_numbers = #tpu.dot_dimension_numbers<[1], [0], [0], [1], [0, 0, 1, 1], [], []>} : vector<8x64xbf16>, vector<64x256xbf16>, vector<8x256xf32> -> vector<8x256xf32>
    %344 = arith.addf %341, %343 : vector<8x256xf32>
    %345 = vector.extract_strided_slice %344 {offsets = [0, 0], sizes = [8, 64], strides = [1, 1]} : vector<8x256xf32> to vector<8x64xf32>
    %346 = arith.negf %345 : vector<8x64xf32>
    %347 = math.exp %346 : vector<8x64xf32>
    %cst_91 = arith.constant 1.000000e+00 : f32
    %348 = vector.broadcast %cst_91 : f32 to vector<8x64xf32>
    %349 = arith.addf %348, %347 : vector<8x64xf32>
    %350 = arith.divf %348, %349 : vector<8x64xf32>
    %351 = vector.extract_strided_slice %344 {offsets = [0, 64], sizes = [8, 64], strides = [1, 1]} : vector<8x256xf32> to vector<8x64xf32>
    %352 = arith.negf %351 : vector<8x64xf32>
    %353 = math.exp %352 : vector<8x64xf32>
    %cst_92 = arith.constant 1.000000e+00 : f32
    %354 = vector.broadcast %cst_92 : f32 to vector<8x64xf32>
    %355 = arith.addf %354, %353 : vector<8x64xf32>
    %356 = arith.divf %354, %355 : vector<8x64xf32>
    %357 = vector.extract_strided_slice %344 {offsets = [0, 128], sizes = [8, 64], strides = [1, 1]} : vector<8x256xf32> to vector<8x64xf32>
    %358 = math.tanh %357 : vector<8x64xf32>
    %359 = vector.extract_strided_slice %344 {offsets = [0, 192], sizes = [8, 64], strides = [1, 1]} : vector<8x256xf32> to vector<8x64xf32>
    %360 = arith.negf %359 : vector<8x64xf32>
    %361 = math.exp %360 : vector<8x64xf32>
    %cst_93 = arith.constant 1.000000e+00 : f32
    %362 = vector.broadcast %cst_93 : f32 to vector<8x64xf32>
    %363 = arith.addf %362, %361 : vector<8x64xf32>
    %364 = arith.divf %362, %363 : vector<8x64xf32>
    %365 = arith.mulf %356, %337 : vector<8x64xf32>
    %366 = arith.mulf %350, %358 : vector<8x64xf32>
    %367 = arith.addf %365, %366 : vector<8x64xf32>
    %368 = math.tanh %367 : vector<8x64xf32>
    %369 = arith.mulf %364, %368 : vector<8x64xf32>
    %c88_94 = arith.constant 88 : index
    %c0_95 = arith.constant 0 : index
    %370 = vector.load %arg8[%c88_94, %c0_95] : memref<128x64xf32, #tpu.memory_space<vmem>>, vector<8x64xf32>
    tpu.vector_store %arg8[%c88_94, %c0_95], %369 {strides = array<i32>} : memref<128x64xf32, #tpu.memory_space<vmem>>, vector<8x64xf32>,
    %c96 = arith.constant 96 : index
    %c0_96 = arith.constant 0 : index
    %371 = vector.load %arg7[%c96, %c0_96] : memref<128x256xf32, #tpu.memory_space<vmem>>, vector<8x256xf32>
    %372 = arith.truncf %369 : vector<8x64xf32> to vector<8x64xbf16>
    %cst_97 = arith.constant dense<0.000000e+00> : vector<8x256xf32>
    %373 = tpu.matmul %372, %1, %cst_97 {dimension_numbers = #tpu.dot_dimension_numbers<[1], [0], [0], [1], [0, 0, 1, 1], [], []>} : vector<8x64xbf16>, vector<64x256xbf16>, vector<8x256xf32> -> vector<8x256xf32>
    %374 = arith.addf %371, %373 : vector<8x256xf32>
    %375 = vector.extract_strided_slice %374 {offsets = [0, 0], sizes = [8, 64], strides = [1, 1]} : vector<8x256xf32> to vector<8x64xf32>
    %376 = arith.negf %375 : vector<8x64xf32>
    %377 = math.exp %376 : vector<8x64xf32>
    %cst_98 = arith.constant 1.000000e+00 : f32
    %378 = vector.broadcast %cst_98 : f32 to vector<8x64xf32>
    %379 = arith.addf %378, %377 : vector<8x64xf32>
    %380 = arith.divf %378, %379 : vector<8x64xf32>
    %381 = vector.extract_strided_slice %374 {offsets = [0, 64], sizes = [8, 64], strides = [1, 1]} : vector<8x256xf32> to vector<8x64xf32>
    %382 = arith.negf %381 : vector<8x64xf32>
    %383 = math.exp %382 : vector<8x64xf32>
    %cst_99 = arith.constant 1.000000e+00 : f32
    %384 = vector.broadcast %cst_99 : f32 to vector<8x64xf32>
    %385 = arith.addf %384, %383 : vector<8x64xf32>
    %386 = arith.divf %384, %385 : vector<8x64xf32>
    %387 = vector.extract_strided_slice %374 {offsets = [0, 128], sizes = [8, 64], strides = [1, 1]} : vector<8x256xf32> to vector<8x64xf32>
    %388 = math.tanh %387 : vector<8x64xf32>
    %389 = vector.extract_strided_slice %374 {offsets = [0, 192], sizes = [8, 64], strides = [1, 1]} : vector<8x256xf32> to vector<8x64xf32>
    %390 = arith.negf %389 : vector<8x64xf32>
    %391 = math.exp %390 : vector<8x64xf32>
    %cst_100 = arith.constant 1.000000e+00 : f32
    %392 = vector.broadcast %cst_100 : f32 to vector<8x64xf32>
    %393 = arith.addf %392, %391 : vector<8x64xf32>
    %394 = arith.divf %392, %393 : vector<8x64xf32>
    %395 = arith.mulf %386, %367 : vector<8x64xf32>
    %396 = arith.mulf %380, %388 : vector<8x64xf32>
    %397 = arith.addf %395, %396 : vector<8x64xf32>
    %398 = math.tanh %397 : vector<8x64xf32>
    %399 = arith.mulf %394, %398 : vector<8x64xf32>
    %c96_101 = arith.constant 96 : index
    %c0_102 = arith.constant 0 : index
    %400 = vector.load %arg8[%c96_101, %c0_102] : memref<128x64xf32, #tpu.memory_space<vmem>>, vector<8x64xf32>
    tpu.vector_store %arg8[%c96_101, %c0_102], %399 {strides = array<i32>} : memref<128x64xf32, #tpu.memory_space<vmem>>, vector<8x64xf32>,
    %c104 = arith.constant 104 : index
    %c0_103 = arith.constant 0 : index
    %401 = vector.load %arg7[%c104, %c0_103] : memref<128x256xf32, #tpu.memory_space<vmem>>, vector<8x256xf32>
    %402 = arith.truncf %399 : vector<8x64xf32> to vector<8x64xbf16>
    %cst_104 = arith.constant dense<0.000000e+00> : vector<8x256xf32>
    %403 = tpu.matmul %402, %1, %cst_104 {dimension_numbers = #tpu.dot_dimension_numbers<[1], [0], [0], [1], [0, 0, 1, 1], [], []>} : vector<8x64xbf16>, vector<64x256xbf16>, vector<8x256xf32> -> vector<8x256xf32>
    %404 = arith.addf %401, %403 : vector<8x256xf32>
    %405 = vector.extract_strided_slice %404 {offsets = [0, 0], sizes = [8, 64], strides = [1, 1]} : vector<8x256xf32> to vector<8x64xf32>
    %406 = arith.negf %405 : vector<8x64xf32>
    %407 = math.exp %406 : vector<8x64xf32>
    %cst_105 = arith.constant 1.000000e+00 : f32
    %408 = vector.broadcast %cst_105 : f32 to vector<8x64xf32>
    %409 = arith.addf %408, %407 : vector<8x64xf32>
    %410 = arith.divf %408, %409 : vector<8x64xf32>
    %411 = vector.extract_strided_slice %404 {offsets = [0, 64], sizes = [8, 64], strides = [1, 1]} : vector<8x256xf32> to vector<8x64xf32>
    %412 = arith.negf %411 : vector<8x64xf32>
    %413 = math.exp %412 : vector<8x64xf32>
    %cst_106 = arith.constant 1.000000e+00 : f32
    %414 = vector.broadcast %cst_106 : f32 to vector<8x64xf32>
    %415 = arith.addf %414, %413 : vector<8x64xf32>
    %416 = arith.divf %414, %415 : vector<8x64xf32>
    %417 = vector.extract_strided_slice %404 {offsets = [0, 128], sizes = [8, 64], strides = [1, 1]} : vector<8x256xf32> to vector<8x64xf32>
    %418 = math.tanh %417 : vector<8x64xf32>
    %419 = vector.extract_strided_slice %404 {offsets = [0, 192], sizes = [8, 64], strides = [1, 1]} : vector<8x256xf32> to vector<8x64xf32>
    %420 = arith.negf %419 : vector<8x64xf32>
    %421 = math.exp %420 : vector<8x64xf32>
    %cst_107 = arith.constant 1.000000e+00 : f32
    %422 = vector.broadcast %cst_107 : f32 to vector<8x64xf32>
    %423 = arith.addf %422, %421 : vector<8x64xf32>
    %424 = arith.divf %422, %423 : vector<8x64xf32>
    %425 = arith.mulf %416, %397 : vector<8x64xf32>
    %426 = arith.mulf %410, %418 : vector<8x64xf32>
    %427 = arith.addf %425, %426 : vector<8x64xf32>
    %428 = math.tanh %427 : vector<8x64xf32>
    %429 = arith.mulf %424, %428 : vector<8x64xf32>
    %c104_108 = arith.constant 104 : index
    %c0_109 = arith.constant 0 : index
    %430 = vector.load %arg8[%c104_108, %c0_109] : memref<128x64xf32, #tpu.memory_space<vmem>>, vector<8x64xf32>
    tpu.vector_store %arg8[%c104_108, %c0_109], %429 {strides = array<i32>} : memref<128x64xf32, #tpu.memory_space<vmem>>, vector<8x64xf32>,
    %c112 = arith.constant 112 : index
    %c0_110 = arith.constant 0 : index
    %431 = vector.load %arg7[%c112, %c0_110] : memref<128x256xf32, #tpu.memory_space<vmem>>, vector<8x256xf32>
    %432 = arith.truncf %429 : vector<8x64xf32> to vector<8x64xbf16>
    %cst_111 = arith.constant dense<0.000000e+00> : vector<8x256xf32>
    %433 = tpu.matmul %432, %1, %cst_111 {dimension_numbers = #tpu.dot_dimension_numbers<[1], [0], [0], [1], [0, 0, 1, 1], [], []>} : vector<8x64xbf16>, vector<64x256xbf16>, vector<8x256xf32> -> vector<8x256xf32>
    %434 = arith.addf %431, %433 : vector<8x256xf32>
    %435 = vector.extract_strided_slice %434 {offsets = [0, 0], sizes = [8, 64], strides = [1, 1]} : vector<8x256xf32> to vector<8x64xf32>
    %436 = arith.negf %435 : vector<8x64xf32>
    %437 = math.exp %436 : vector<8x64xf32>
    %cst_112 = arith.constant 1.000000e+00 : f32
    %438 = vector.broadcast %cst_112 : f32 to vector<8x64xf32>
    %439 = arith.addf %438, %437 : vector<8x64xf32>
    %440 = arith.divf %438, %439 : vector<8x64xf32>
    %441 = vector.extract_strided_slice %434 {offsets = [0, 64], sizes = [8, 64], strides = [1, 1]} : vector<8x256xf32> to vector<8x64xf32>
    %442 = arith.negf %441 : vector<8x64xf32>
    %443 = math.exp %442 : vector<8x64xf32>
    %cst_113 = arith.constant 1.000000e+00 : f32
    %444 = vector.broadcast %cst_113 : f32 to vector<8x64xf32>
    %445 = arith.addf %444, %443 : vector<8x64xf32>
    %446 = arith.divf %444, %445 : vector<8x64xf32>
    %447 = vector.extract_strided_slice %434 {offsets = [0, 128], sizes = [8, 64], strides = [1, 1]} : vector<8x256xf32> to vector<8x64xf32>
    %448 = math.tanh %447 : vector<8x64xf32>
    %449 = vector.extract_strided_slice %434 {offsets = [0, 192], sizes = [8, 64], strides = [1, 1]} : vector<8x256xf32> to vector<8x64xf32>
    %450 = arith.negf %449 : vector<8x64xf32>
    %451 = math.exp %450 : vector<8x64xf32>
    %cst_114 = arith.constant 1.000000e+00 : f32
    %452 = vector.broadcast %cst_114 : f32 to vector<8x64xf32>
    %453 = arith.addf %452, %451 : vector<8x64xf32>
    %454 = arith.divf %452, %453 : vector<8x64xf32>
    %455 = arith.mulf %446, %427 : vector<8x64xf32>
    %456 = arith.mulf %440, %448 : vector<8x64xf32>
    %457 = arith.addf %455, %456 : vector<8x64xf32>
    %458 = math.tanh %457 : vector<8x64xf32>
    %459 = arith.mulf %454, %458 : vector<8x64xf32>
    %c112_115 = arith.constant 112 : index
    %c0_116 = arith.constant 0 : index
    %460 = vector.load %arg8[%c112_115, %c0_116] : memref<128x64xf32, #tpu.memory_space<vmem>>, vector<8x64xf32>
    tpu.vector_store %arg8[%c112_115, %c0_116], %459 {strides = array<i32>} : memref<128x64xf32, #tpu.memory_space<vmem>>, vector<8x64xf32>,
    %c120 = arith.constant 120 : index
    %c0_117 = arith.constant 0 : index
    %461 = vector.load %arg7[%c120, %c0_117] : memref<128x256xf32, #tpu.memory_space<vmem>>, vector<8x256xf32>
    %462 = arith.truncf %459 : vector<8x64xf32> to vector<8x64xbf16>
    %cst_118 = arith.constant dense<0.000000e+00> : vector<8x256xf32>
    %463 = tpu.matmul %462, %1, %cst_118 {dimension_numbers = #tpu.dot_dimension_numbers<[1], [0], [0], [1], [0, 0, 1, 1], [], []>} : vector<8x64xbf16>, vector<64x256xbf16>, vector<8x256xf32> -> vector<8x256xf32>
    %464 = arith.addf %461, %463 : vector<8x256xf32>
    %465 = vector.extract_strided_slice %464 {offsets = [0, 0], sizes = [8, 64], strides = [1, 1]} : vector<8x256xf32> to vector<8x64xf32>
    %466 = arith.negf %465 : vector<8x64xf32>
    %467 = math.exp %466 : vector<8x64xf32>
    %cst_119 = arith.constant 1.000000e+00 : f32
    %468 = vector.broadcast %cst_119 : f32 to vector<8x64xf32>
    %469 = arith.addf %468, %467 : vector<8x64xf32>
    %470 = arith.divf %468, %469 : vector<8x64xf32>
    %471 = vector.extract_strided_slice %464 {offsets = [0, 64], sizes = [8, 64], strides = [1, 1]} : vector<8x256xf32> to vector<8x64xf32>
    %472 = arith.negf %471 : vector<8x64xf32>
    %473 = math.exp %472 : vector<8x64xf32>
    %cst_120 = arith.constant 1.000000e+00 : f32
    %474 = vector.broadcast %cst_120 : f32 to vector<8x64xf32>
    %475 = arith.addf %474, %473 : vector<8x64xf32>
    %476 = arith.divf %474, %475 : vector<8x64xf32>
    %477 = vector.extract_strided_slice %464 {offsets = [0, 128], sizes = [8, 64], strides = [1, 1]} : vector<8x256xf32> to vector<8x64xf32>
    %478 = math.tanh %477 : vector<8x64xf32>
    %479 = vector.extract_strided_slice %464 {offsets = [0, 192], sizes = [8, 64], strides = [1, 1]} : vector<8x256xf32> to vector<8x64xf32>
    %480 = arith.negf %479 : vector<8x64xf32>
    %481 = math.exp %480 : vector<8x64xf32>
    %cst_121 = arith.constant 1.000000e+00 : f32
    %482 = vector.broadcast %cst_121 : f32 to vector<8x64xf32>
    %483 = arith.addf %482, %481 : vector<8x64xf32>
    %484 = arith.divf %482, %483 : vector<8x64xf32>
    %485 = arith.mulf %476, %457 : vector<8x64xf32>
    %486 = arith.mulf %470, %478 : vector<8x64xf32>
    %487 = arith.addf %485, %486 : vector<8x64xf32>
    %488 = math.tanh %487 : vector<8x64xf32>
    %489 = arith.mulf %484, %488 : vector<8x64xf32>
    %c120_122 = arith.constant 120 : index
    %c0_123 = arith.constant 0 : index
    %490 = vector.load %arg8[%c120_122, %c0_123] : memref<128x64xf32, #tpu.memory_space<vmem>>, vector<8x64xf32>
    tpu.vector_store %arg8[%c120_122, %c0_123], %489 {strides = array<i32>} : memref<128x64xf32, #tpu.memory_space<vmem>>, vector<8x64xf32>,
    %c0_124 = arith.constant 0 : index
    %c0_125 = arith.constant 0 : index
    %491 = vector.load %arg8[%c0_124, %c0_125] : memref<128x64xf32, #tpu.memory_space<vmem>>, vector<128x64xf32>
    %492 = arith.truncf %491 : vector<128x64xf32> to vector<128x64xbf16>
    %c0_126 = arith.constant 0 : index
    %c0_127 = arith.constant 0 : index
    %493 = vector.load %arg4[%c0_126, %c0_127] : memref<64x128xbf16, #tpu.memory_space<vmem>>, vector<64x128xbf16>
    %cst_128 = arith.constant dense<0.000000e+00> : vector<128x128xf32>
    %494 = tpu.matmul %492, %493, %cst_128 {dimension_numbers = #tpu.dot_dimension_numbers<[1], [0], [0], [1], [0, 0, 1, 1], [], []>} : vector<128x64xbf16>, vector<64x128xbf16>, vector<128x128xf32> -> vector<128x128xf32>
    %c0_129 = arith.constant 0 : index
    %c0_130 = arith.constant 0 : index
    %495 = vector.load %arg5[%c0_129, %c0_130] : memref<1x128xf32, #tpu.memory_space<vmem>>, vector<1x128xf32>
    %496 = vector.broadcast %495 : vector<1x128xf32> to vector<128x128xf32>
    %497 = arith.addf %494, %496 : vector<128x128xf32>
    %c0_131 = arith.constant 0 : index
    %c0_132 = arith.constant 0 : index
    %498 = vector.load %arg6[%c0_131, %c0_132] : memref<128x128xf32, #tpu.memory_space<vmem>>, vector<128x128xf32>
    tpu.vector_store %arg6[%c0_131, %c0_132], %497 {strides = array<i32>} : memref<128x128xf32, #tpu.memory_space<vmem>>, vector<128x128xf32>,
    return
  }
}

</mosaic_0001>

<llo_original>
// kernel: tpu_custom_call.1
$region0: #{tpu_custom_call.1}
  #allocation0 [shape = 'u32[]', space=smem, size = 0x4, offset = 0x4, fixed_abs, tag = 'smem constant byte address 0x4 - core index']
  #allocation1 [shape = 'u32[72,128]{1,0:T(1,128)}', space=vmem, size = 0x9000, scoped, tag = 'internal scratch']
  #allocation2 [shape = 'f32[128,256]{1,0:T(8,128)}', space=vmem, size = 0x20000, scoped, tag = 'scratch operand']
  #allocation3 [shape = 'f32[128,64]{1,0:T(8,128)}', space=vmem, size = 0x10000, scoped, tag = 'scratch operand']
  %s0 = inlined_call_operand.vmem [shape: f32[128,32], index: 0, kind: input, shape index: {}]
  %s1 = inlined_call_operand.vmem [shape: bf16[32,256], index: 1, kind: input, shape index: {}]
  %s2 = inlined_call_operand.vmem [shape: bf16[64,256], index: 2, kind: input, shape index: {}]
  %s3 = inlined_call_operand.vmem [shape: f32[1,256], index: 3, kind: input, shape index: {}]
  %s4 = inlined_call_operand.vmem [shape: bf16[64,128], index: 4, kind: input, shape index: {}]
  %s5 = inlined_call_operand.vmem [shape: f32[1,128], index: 5, kind: input, shape index: {}]
  %s6 = inlined_call_operand.hbm [shape: f32[128,128], index: 6, kind: output, shape index: {}]
  %s7 = sld [smem:[#allocation0]]
  $region34: #{tpu_custom_call.1} parent=0
    _
  %s9 = ssub.s32 1, %s7
  %s10 = scalar_select 0, %s9, %s7
  $region1: #{tpu_custom_call.1} parent=0
    #allocation4 [shape = 'u8[65536]{0}', space=vmem, size = 0x10000, scoped, tag = 'output window, operand 0, single buffered']
    #allocation5 [shape = 's32[1]{0}', space=sflag, size = 0x4, scoped, tag = 'scoped memory for tpu_custom_call.1']
    %11 = vsyncpa [#allocation5], 0
    // Predicated region
    $region2: #{tpu_custom_call.1} parent=1 // pred_check
      _
    $region3: #{tpu_custom_call.1} parent=1 // pred_check_branch
      %13 = sbr.rel (0) target = $region5
    $region4: #{tpu_custom_call.1} parent=1 // pred_region
      _
    $region5: #{tpu_custom_call.1} parent=1 // pred_fallthru
      _
    // Predicated region
    $region6: #{tpu_custom_call.1} parent=1 // pred_check
      _
    $region7: #{tpu_custom_call.1} parent=1 // pred_check_branch
      %15 = sbr.rel (0) target = $region9
    $region8: #{tpu_custom_call.1} parent=1 // pred_region
      _
    $region9: #{tpu_custom_call.1} parent=1 // pred_fallthru
      _
    // Predicated region
    $region10: #{tpu_custom_call.1} parent=1 // pred_check
      _
    $region11: #{tpu_custom_call.1} parent=1 // pred_check_branch
      %17 = sbr.rel (0) target = $region13
    $region12: #{tpu_custom_call.1} parent=1 // pred_region
      _
    $region13: #{tpu_custom_call.1} parent=1 // pred_fallthru
      _
    // Predicated region
    $region14: #{tpu_custom_call.1} parent=1 // pred_check
      _
    $region15: #{tpu_custom_call.1} parent=1 // pred_check_branch
      %19 = sbr.rel (0) target = $region17
    $region16: #{tpu_custom_call.1} parent=1 // pred_region
      _
    $region17: #{tpu_custom_call.1} parent=1 // pred_fallthru
      _
    // Predicated region
    $region18: #{tpu_custom_call.1} parent=1 // pred_check
      _
    $region19: #{tpu_custom_call.1} parent=1 // pred_check_branch
      %21 = sbr.rel (0) target = $region21
    $region20: #{tpu_custom_call.1} parent=1 // pred_region
      _
    $region21: #{tpu_custom_call.1} parent=1 // pred_fallthru
      _
    // Predicated region
    $region22: #{tpu_custom_call.1} parent=1 // pred_check
      _
    $region23: #{tpu_custom_call.1} parent=1 // pred_check_branch
      %23 = sbr.rel (0) target = $region25
    $region24: #{tpu_custom_call.1} parent=1 // pred_region
      _
    $region25: #{tpu_custom_call.1} parent=1 // pred_fallthru
      _
    %v25 = vld [vmem:[%s1] sm:$0xff]
    %v26 = vld [vmem:[%s1 + $0x8] sm:$0xff]
    %v27 = vld [vmem:[%s1 + $0x10] sm:$0xff]
    %v28 = vld [vmem:[%s1 + $0x18] sm:$0xff]
    %v29 = vld [vmem:[%s2] sm:$0xff]
    %v30 = vld [vmem:[%s2 + $0x8] sm:$0xff]
    %v31 = vld [vmem:[%s2 + $0x10] sm:$0xff]
    %v32 = vld [vmem:[%s2 + $0x18] sm:$0xff]
    %v33 = vld [vmem:[%s2 + $0x20] sm:$0xff]
    %v34 = vld [vmem:[%s2 + $0x28] sm:$0xff]
    %v35 = vld [vmem:[%s2 + $0x30] sm:$0xff]
    %v36 = vld [vmem:[%s2 + $0x38] sm:$0xff]
    %v37 = vld [vmem:[%s3] sm:$0x3]
    %v38 = vld [vmem:[%s0] sm:$0xff]
    %v39 = vld [vmem:[%s0 + $0x8] sm:$0xff]
    %v40 = vld [vmem:[%s0 + $0x10] sm:$0xff]
    %v41 = vld [vmem:[%s0 + $0x18] sm:$0xff]
    %v42 = vld [vmem:[%s0 + $0x20] sm:$0xff]
    %v43 = vld [vmem:[%s0 + $0x28] sm:$0xff]
    %v44 = vld [vmem:[%s0 + $0x30] sm:$0xff]
    %v45 = vld [vmem:[%s0 + $0x38] sm:$0xff]
    %v46 = vld [vmem:[%s0 + $0x40] sm:$0xff]
    %v47 = vld [vmem:[%s0 + $0x48] sm:$0xff]
    %v48 = vld [vmem:[%s0 + $0x50] sm:$0xff]
    %v49 = vld [vmem:[%s0 + $0x58] sm:$0xff]
    %v50 = vld [vmem:[%s0 + $0x60] sm:$0xff]
    %v51 = vld [vmem:[%s0 + $0x68] sm:$0xff]
    %v52 = vld [vmem:[%s0 + $0x70] sm:$0xff]
    %v53 = vld [vmem:[%s0 + $0x78] sm:$0xff]
    %v54 = vpack.c.bf16 %v39, %v38
    %v55 = vpack.c.bf16 %v41, %v40
    %v56 = vpack.c.bf16 %v43, %v42
    %v57 = vpack.c.bf16 %v45, %v44
    %v58 = vpack.c.bf16 %v47, %v46
    %v59 = vpack.c.bf16 %v49, %v48
    %v60 = vpack.c.bf16 %v51, %v50
    %v61 = vpack.c.bf16 %v53, %v52
    %v63 = vperm.slane %v37, 0
    %v64 = vperm.slane %v37, 1
    %v71 = vunpack.c.l.b16 %v25
    %v72 = vunpack.c.h.b16 %v25
    %v73 = vunpack.c.l.b16 %v26
    %v74 = vunpack.c.h.b16 %v26
    %v75 = vunpack.c.l.b16 %v27
    %v76 = vunpack.c.h.b16 %v27
    %v77 = vunpack.c.l.b16 %v28
    %v78 = vunpack.c.h.b16 %v28
    %v79 = vpack.c.b16 %v73, %v71
    %v80 = vpack.c.b16 %v74, %v72
    %v81 = vpack.c.b16 %v77, %v75
    %v82 = vpack.c.b16 %v78, %v76
    %vm87 = vcmask 261120
    %v89 = vsel %vm87, %v54, 0
    %v92 = vsel %vm87, %v55, 0
    %v95 = vsel %vm87, %v56, 0
    %v98 = vsel %vm87, %v57, 0
    %v101 = vsel %vm87, %v58, 0
    %v104 = vsel %vm87, %v59, 0
    %v107 = vsel %vm87, %v60, 0
    %v110 = vsel %vm87, %v61, 0
    %112 = vmatpush.bf16.msra.mxu0 0
    %113 = vmatpush.bf16.msra.mxu0 0
    %114 = vmatpush.bf16.msra.mxu0 0
    %115 = vmatpush.bf16.msra.mxu0 0
    %116 = vmatpush.bf16.msra.mxu0 0
    %117 = vmatpush.bf16.msra.mxu0 0
    %118 = vmatpush.bf16.msra.mxu0 %v81
    %119 = vmatpush.bf16.msra.mxu0 %v79
    %120 = vmatmul.bf16.gmra.mxu0 %v89
    %v121 = vpop.f32.mrf.mxu0
    %v122 = vadd.f32 %v63, %v121
    %v123 = vpop.f32.mrf.mxu0
    %v124 = vadd.f32 %v63, %v123
    %125 = vmatmul.bf16.gmra.mxu0 %v92
    %v126 = vpop.f32.mrf.mxu0
    %v127 = vadd.f32 %v63, %v126
    %v128 = vpop.f32.mrf.mxu0
    %v129 = vadd.f32 %v63, %v128
    %130 = vmatmul.bf16.gmra.mxu0 %v95
    %v131 = vpop.f32.mrf.mxu0
    %v132 = vadd.f32 %v63, %v131
    %v133 = vpop.f32.mrf.mxu0
    %v134 = vadd.f32 %v63, %v133
    %135 = vmatmul.bf16.gmra.mxu0 %v98
    %v136 = vpop.f32.mrf.mxu0
    %v137 = vadd.f32 %v63, %v136
    %v138 = vpop.f32.mrf.mxu0
    %v139 = vadd.f32 %v63, %v138
    %140 = vmatmul.bf16.gmra.mxu0 %v101
    %v141 = vpop.f32.mrf.mxu0
    %v142 = vadd.f32 %v63, %v141
    %v143 = vpop.f32.mrf.mxu0
    %v144 = vadd.f32 %v63, %v143
    %145 = vmatmul.bf16.gmra.mxu0 %v104
    %v146 = vpop.f32.mrf.mxu0
    %v147 = vadd.f32 %v63, %v146
    %v148 = vpop.f32.mrf.mxu0
    %v149 = vadd.f32 %v63, %v148
    %150 = vmatmul.bf16.gmra.mxu0 %v107
    %v151 = vpop.f32.mrf.mxu0
    %v152 = vadd.f32 %v63, %v151
    %v153 = vpop.f32.mrf.mxu0
    %v154 = vadd.f32 %v63, %v153
    %155 = vmatmul.bf16.gmra.mxu0 %v110
    %v156 = vpop.f32.mrf.mxu0
    %v157 = vadd.f32 %v63, %v156
    %v158 = vpop.f32.mrf.mxu0
    %v159 = vadd.f32 %v63, %v158
    %160 = vdwg.mxu0
    %161 = vmatpush.bf16.msra.mxu0 0
    %162 = vmatpush.bf16.msra.mxu0 0
    %163 = vmatpush.bf16.msra.mxu0 0
    %164 = vmatpush.bf16.msra.mxu0 0
    %165 = vmatpush.bf16.msra.mxu0 0
    %166 = vmatpush.bf16.msra.mxu0 0
    %167 = vmatpush.bf16.msra.mxu0 %v82
    %168 = vmatpush.bf16.msra.mxu0 %v80
    %169 = vmatmul.bf16.gmra.mxu0 %v89
    %v170 = vpop.f32.mrf.mxu0
    %v171 = vadd.f32 %v64, %v170
    %v172 = vpop.f32.mrf.mxu0
    %v173 = vadd.f32 %v64, %v172
    %174 = vmatmul.bf16.gmra.mxu0 %v92
    %v175 = vpop.f32.mrf.mxu0
    %v176 = vadd.f32 %v64, %v175
    %v177 = vpop.f32.mrf.mxu0
    %v178 = vadd.f32 %v64, %v177
    %179 = vmatmul.bf16.gmra.mxu0 %v95
    %v180 = vpop.f32.mrf.mxu0
    %v181 = vadd.f32 %v64, %v180
    %v182 = vpop.f32.mrf.mxu0
    %v183 = vadd.f32 %v64, %v182
    %184 = vmatmul.bf16.gmra.mxu0 %v98
    %v185 = vpop.f32.mrf.mxu0
    %v186 = vadd.f32 %v64, %v185
    %v187 = vpop.f32.mrf.mxu0
    %v188 = vadd.f32 %v64, %v187
    %189 = vmatmul.bf16.gmra.mxu0 %v101
    %v190 = vpop.f32.mrf.mxu0
    %v191 = vadd.f32 %v64, %v190
    %v192 = vpop.f32.mrf.mxu0
    %v193 = vadd.f32 %v64, %v192
    %194 = vmatmul.bf16.gmra.mxu0 %v104
    %v195 = vpop.f32.mrf.mxu0
    %v196 = vadd.f32 %v64, %v195
    %v197 = vpop.f32.mrf.mxu0
    %v198 = vadd.f32 %v64, %v197
    %199 = vmatmul.bf16.gmra.mxu0 %v107
    %v200 = vpop.f32.mrf.mxu0
    %v201 = vadd.f32 %v64, %v200
    %v202 = vpop.f32.mrf.mxu0
    %v203 = vadd.f32 %v64, %v202
    %204 = vmatmul.bf16.gmra.mxu0 %v110
    %v205 = vpop.f32.mrf.mxu0
    %v206 = vadd.f32 %v64, %v205
    %v207 = vpop.f32.mrf.mxu0
    %v208 = vadd.f32 %v64, %v207
    %209 = vdwg.mxu0
    %210 = vst [vmem:[#allocation2] sm:$0xff] %v122
    %211 = vst [vmem:[#allocation2 + $0x8] sm:$0xff] %v171
    %212 = vst [vmem:[#allocation2 + $0x10] sm:$0xff] %v124
    %213 = vst [vmem:[#allocation2 + $0x18] sm:$0xff] %v173
    %214 = vst [vmem:[#allocation2 + $0x20] sm:$0xff] %v127
    %215 = vst [vmem:[#allocation2 + $0x28] sm:$0xff] %v176
    %216 = vst [vmem:[#allocation2 + $0x30] sm:$0xff] %v129
    %217 = vst [vmem:[#allocation2 + $0x38] sm:$0xff] %v178
    %218 = vst [vmem:[#allocation2 + $0x40] sm:$0xff] %v132
    %219 = vst [vmem:[#allocation2 + $0x48] sm:$0xff] %v181
    %220 = vst [vmem:[#allocation2 + $0x50] sm:$0xff] %v134
    %221 = vst [vmem:[#allocation2 + $0x58] sm:$0xff] %v183
    %222 = vst [vmem:[#allocation2 + $0x60] sm:$0xff] %v137
    %223 = vst [vmem:[#allocation2 + $0x68] sm:$0xff] %v186
    %224 = vst [vmem:[#allocation2 + $0x70] sm:$0xff] %v139
    %225 = vst [vmem:[#allocation2 + $0x78] sm:$0xff] %v188
    %226 = vst [vmem:[#allocation2 + $0x80] sm:$0xff] %v142
    %227 = vst [vmem:[#allocation2 + $0x88] sm:$0xff] %v191
    %228 = vst [vmem:[#allocation2 + $0x90] sm:$0xff] %v144
    %229 = vst [vmem:[#allocation2 + $0x98] sm:$0xff] %v193
    %230 = vst [vmem:[#allocation2 + $0xa0] sm:$0xff] %v147
    %231 = vst [vmem:[#allocation2 + $0xa8] sm:$0xff] %v196
    %232 = vst [vmem:[#allocation2 + $0xb0] sm:$0xff] %v149
    %233 = vst [vmem:[#allocation2 + $0xb8] sm:$0xff] %v198
    %234 = vst [vmem:[#allocation2 + $0xc0] sm:$0xff] %v152
    %235 = vst [vmem:[#allocation2 + $0xc8] sm:$0xff] %v201
    %236 = vst [vmem:[#allocation2 + $0xd0] sm:$0xff] %v154
    %237 = vst [vmem:[#allocation2 + $0xd8] sm:$0xff] %v203
    %238 = vst [vmem:[#allocation2 + $0xe0] sm:$0xff] %v157
    %239 = vst [vmem:[#allocation2 + $0xe8] sm:$0xff] %v206
    %240 = vst [vmem:[#allocation2 + $0xf0] sm:$0xff] %v159
    %241 = vst [vmem:[#allocation2 + $0xf8] sm:$0xff] %v208
    %v242 = vld [vmem:[#allocation2] sm:$0xff]
    %v243 = vld [vmem:[#allocation2 + $0x8] sm:$0xff]
    %v252 = vunpack.c.l.b16 %v29
    %v253 = vunpack.c.h.b16 %v29
    %v254 = vunpack.c.l.b16 %v30
    %v255 = vunpack.c.h.b16 %v30
    %v256 = vunpack.c.l.b16 %v31
    %v257 = vunpack.c.h.b16 %v31
    %v258 = vunpack.c.l.b16 %v32
    %v259 = vunpack.c.h.b16 %v32
    %v260 = vunpack.c.l.b16 %v33
    %v261 = vunpack.c.h.b16 %v33
    %v262 = vunpack.c.l.b16 %v34
    %v263 = vunpack.c.h.b16 %v34
    %v264 = vunpack.c.l.b16 %v35
    %v265 = vunpack.c.h.b16 %v35
    %v266 = vunpack.c.l.b16 %v36
    %v267 = vunpack.c.h.b16 %v36
    %v268 = vpack.c.b16 %v254, %v252
    %v269 = vpack.c.b16 %v255, %v253
    %v270 = vpack.c.b16 %v258, %v256
    %v271 = vpack.c.b16 %v259, %v257
    %v272 = vpack.c.b16 %v262, %v260
    %v273 = vpack.c.b16 %v263, %v261
    %v274 = vpack.c.b16 %v266, %v264
    %v275 = vpack.c.b16 %v267, %v265
    %vm284 = vcmask 523264
    %v286 = vsel %vm284, 0, 0
    %288 = vmatpush.bf16.msra.mxu0 0
    %289 = vmatpush.bf16.msra.mxu0 0
    %290 = vmatpush.bf16.msra.mxu0 0
    %291 = vmatpush.bf16.msra.mxu0 0
    %292 = vmatpush.bf16.msra.mxu0 %v274
    %293 = vmatpush.bf16.msra.mxu0 %v272
    %294 = vmatpush.bf16.msra.mxu0 %v270
    %295 = vmatpush.bf16.msra.mxu0 %v268
    %296 = vmatmul.bf16.gmra.mxu0 %v286
    %v297 = vpop.f32.mrf.mxu0
    %v298 = vadd.f32 0.0, %v297
    %v299 = vpop.f32.mrf.mxu0
    %300 = vdwg.mxu0
    %301 = vmatpush.bf16.msra.mxu0 0
    %302 = vmatpush.bf16.msra.mxu0 0
    %303 = vmatpush.bf16.msra.mxu0 0
    %304 = vmatpush.bf16.msra.mxu0 0
    %305 = vmatpush.bf16.msra.mxu0 %v275
    %306 = vmatpush.bf16.msra.mxu0 %v273
    %307 = vmatpush.bf16.msra.mxu0 %v271
    %308 = vmatpush.bf16.msra.mxu0 %v269
    %309 = vmatmul.bf16.gmra.mxu0 %v286
    %v310 = vpop.f32.mrf.mxu0
    %v311 = vadd.f32 0.0, %v310
    %v312 = vpop.f32.mrf.mxu0
    %313 = vdwg.mxu0
    %v314 = vadd.f32 %v242, %v298
    %v315 = vadd.f32 %v243, %v311
    %v316 = vxor.u32 %v314, 2147483648
    %v317 = vmul.f32 %v316, 1.442695
    %v318 = vpow.pop %v317
    %v319 = vadd.f32 %v318, 1.0
    %v320 = vrcp.pop %v319
    %v321 = vmul.f32 %v319, %v320
    %v322 = vsub.f32 1.0, %v321
    %v323 = vmul.f32 %v320, %v322
    %v324 = vadd.f32 %v320, %v323
    %vm325 = vweird.f32 %v319
    %vm326 = vweird.f32 %v320
    %vm327 = vmor %vm325, %vm326
    %v328 = vsel %vm327, %v320, %v324
    %v329 = vand.u32 2147483647, %v319
    %vm330 = vcmp.eq.f32.partialorder %v329, 8.507059e+37
    %v331 = vand.u32 %v319, 2147483648
    %v332 = vor.u32 1.1754944e-38, %v331
    %v333 = vsel %vm330, %v332, %v328
    %v334 = vmul.f32 1.0, %v333
    %v335 = vtanh.pop %v315
    %v336 = vxor.u32 %v315, 2147483648
    %v337 = vmul.f32 %v336, 1.442695
    %v338 = vpow.pop %v337
    %v339 = vadd.f32 %v338, 1.0
    %v340 = vrcp.pop %v339
    %v341 = vmul.f32 %v339, %v340
    %v342 = vsub.f32 1.0, %v341
    %v343 = vmul.f32 %v340, %v342
    %v344 = vadd.f32 %v340, %v343
    %vm345 = vweird.f32 %v339
    %vm346 = vweird.f32 %v340
    %vm347 = vmor %vm345, %vm346
    %v348 = vsel %vm347, %v340, %v344
    %v349 = vand.u32 2147483647, %v339
    %vm350 = vcmp.eq.f32.partialorder %v349, 8.507059e+37
    %v351 = vand.u32 %v339, 2147483648
    %v352 = vor.u32 1.1754944e-38, %v351
    %v353 = vsel %vm350, %v352, %v348
    %v354 = vmul.f32 1.0, %v353
    %v355 = vmul.f32 %v334, 0.0
    %v356 = vmul.f32 %v334, %v335
    %358 = vrot.lane.b32.xlu0 %v356, 64
    %v359 = vpop.permute.xlu0 %358
    %v361 = vadd.f32 %v355, %v359
    %v362 = vtanh.pop %v361
    %v363 = vmul.f32 %v354, %v362
    %365 = vrot.lane.b32.xlu0 %v363, 64
    %v366 = vpop.permute.xlu0 %365
    %368 = vst.msk [vmem:[#allocation3] sm:$0xff] %vm284, %v366
    %v369 = vld [vmem:[#allocation2 + $0x10] sm:$0xff]
    %v370 = vld [vmem:[#allocation2 + $0x18] sm:$0xff]
    %v371 = vpack.c.bf16 %v363, %v363
    %373 = vrot.lane.b32.xlu0 %v371, 64
    %v374 = vpop.permute.xlu0 %373
    %v376 = vsel %vm284, %v374, 0
    %378 = vmatpush.bf16.msra.mxu0 0
    %379 = vmatpush.bf16.msra.mxu0 0
    %380 = vmatpush.bf16.msra.mxu0 0
    %381 = vmatpush.bf16.msra.mxu0 0
    %382 = vmatpush.bf16.msra.mxu0 %v274
    %383 = vmatpush.bf16.msra.mxu0 %v272
    %384 = vmatpush.bf16.msra.mxu0 %v270
    %385 = vmatpush.bf16.msra.mxu0 %v268
    %386 = vmatmul.bf16.gmra.mxu0 %v376
    %v387 = vpop.f32.mrf.mxu0
    %v388 = vadd.f32 0.0, %v387
    %v389 = vpop.f32.mrf.mxu0
    %390 = vdwg.mxu0
    %391 = vmatpush.bf16.msra.mxu0 0
    %392 = vmatpush.bf16.msra.mxu0 0
    %393 = vmatpush.bf16.msra.mxu0 0
    %394 = vmatpush.bf16.msra.mxu0 0
    %395 = vmatpush.bf16.msra.mxu0 %v275
    %396 = vmatpush.bf16.msra.mxu0 %v273
    %397 = vmatpush.bf16.msra.mxu0 %v271
    %398 = vmatpush.bf16.msra.mxu0 %v269
    %399 = vmatmul.bf16.gmra.mxu0 %v376
    %v400 = vpop.f32.mrf.mxu0
    %v401 = vadd.f32 0.0, %v400
    %v402 = vpop.f32.mrf.mxu0
    %403 = vdwg.mxu0
    %v404 = vadd.f32 %v369, %v388
    %v405 = vadd.f32 %v370, %v401
    %v406 = vxor.u32 %v404, 2147483648
    %v407 = vmul.f32 %v406, 1.442695
    %v408 = vpow.pop %v407
    %v409 = vadd.f32 %v408, 1.0
    %v410 = vrcp.pop %v409
    %v411 = vmul.f32 %v409, %v410
    %v412 = vsub.f32 1.0, %v411
    %v413 = vmul.f32 %v410, %v412
    %v414 = vadd.f32 %v410, %v413
    %vm415 = vweird.f32 %v409
    %vm416 = vweird.f32 %v410
    %vm417 = vmor %vm415, %vm416
    %v418 = vsel %vm417, %v410, %v414
    %v419 = vand.u32 2147483647, %v409
    %vm420 = vcmp.eq.f32.partialorder %v419, 8.507059e+37
    %v421 = vand.u32 %v409, 2147483648
    %v422 = vor.u32 1.1754944e-38, %v421
    %v423 = vsel %vm420, %v422, %v418
    %v424 = vmul.f32 1.0, %v423
    %v425 = vtanh.pop %v405
    %v426 = vxor.u32 %v405, 2147483648
    %v427 = vmul.f32 %v426, 1.442695
    %v428 = vpow.pop %v427
    %v429 = vadd.f32 %v428, 1.0
    %v430 = vrcp.pop %v429
    %v431 = vmul.f32 %v429, %v430
    %v432 = vsub.f32 1.0, %v431
    %v433 = vmul.f32 %v430, %v432
    %v434 = vadd.f32 %v430, %v433
    %vm435 = vweird.f32 %v429
    %vm436 = vweird.f32 %v430
    %vm437 = vmor %vm435, %vm436
    %v438 = vsel %vm437, %v430, %v434
    %v439 = vand.u32 2147483647, %v429
    %vm440 = vcmp.eq.f32.partialorder %v439, 8.507059e+37
    %v441 = vand.u32 %v429, 2147483648
    %v442 = vor.u32 1.1754944e-38, %v441
    %v443 = vsel %vm440, %v442, %v438
    %v444 = vmul.f32 1.0, %v443
    %v445 = vmul.f32 %v424, %v361
    %v446 = vmul.f32 %v424, %v425
    %448 = vrot.lane.b32.xlu0 %v446, 64
    %v449 = vpop.permute.xlu0 %448
    %v451 = vadd.f32 %v445, %v449
    %v452 = vtanh.pop %v451
    %v453 = vmul.f32 %v444, %v452
    %455 = vrot.lane.b32.xlu0 %v453, 64
    %v456 = vpop.permute.xlu0 %455
    %458 = vst.msk [vmem:[#allocation3 + $0x8] sm:$0xff] %vm284, %v456
    %v459 = vld [vmem:[#allocation2 + $0x20] sm:$0xff]
    %v460 = vld [vmem:[#allocation2 + $0x28] sm:$0xff]
    %v461 = vpack.c.bf16 %v453, %v453
    %463 = vrot.lane.b32.xlu0 %v461, 64
    %v464 = vpop.permute.xlu0 %463
    %v466 = vsel %vm284, %v464, 0
    %468 = vmatpush.bf16.msra.mxu0 0
    %469 = vmatpush.bf16.msra.mxu0 0
    %470 = vmatpush.bf16.msra.mxu0 0
    %471 = vmatpush.bf16.msra.mxu0 0
    %472 = vmatpush.bf16.msra.mxu0 %v274
    %473 = vmatpush.bf16.msra.mxu0 %v272
    %474 = vmatpush.bf16.msra.mxu0 %v270
    %475 = vmatpush.bf16.msra.mxu0 %v268
    %476 = vmatmul.bf16.gmra.mxu0 %v466
    %v477 = vpop.f32.mrf.mxu0
    %v478 = vadd.f32 0.0, %v477
    %v479 = vpop.f32.mrf.mxu0
    %480 = vdwg.mxu0
    %481 = vmatpush.bf16.msra.mxu0 0
    %482 = vmatpush.bf16.msra.mxu0 0
    %483 = vmatpush.bf16.msra.mxu0 0
    %484 = vmatpush.bf16.msra.mxu0 0
    %485 = vmatpush.bf16.msra.mxu0 %v275
    %486 = vmatpush.bf16.msra.mxu0 %v273
    %487 = vmatpush.bf16.msra.mxu0 %v271
    %488 = vmatpush.bf16.msra.mxu0 %v269
    %489 = vmatmul.bf16.gmra.mxu0 %v466
    %v490 = vpop.f32.mrf.mxu0
    %v491 = vadd.f32 0.0, %v490
    %v492 = vpop.f32.mrf.mxu0
    %493 = vdwg.mxu0
    %v494 = vadd.f32 %v459, %v478
    %v495 = vadd.f32 %v460, %v491
    %v496 = vxor.u32 %v494, 2147483648
    %v497 = vmul.f32 %v496, 1.442695
    %v498 = vpow.pop %v497
    %v499 = vadd.f32 %v498, 1.0
    %v500 = vrcp.pop %v499
    %v501 = vmul.f32 %v499, %v500
    %v502 = vsub.f32 1.0, %v501
    %v503 = vmul.f32 %v500, %v502
    %v504 = vadd.f32 %v500, %v503
    %vm505 = vweird.f32 %v499
    %vm506 = vweird.f32 %v500
    %vm507 = vmor %vm505, %vm506
    %v508 = vsel %vm507, %v500, %v504
    %v509 = vand.u32 2147483647, %v499
    %vm510 = vcmp.eq.f32.partialorder %v509, 8.507059e+37
    %v511 = vand.u32 %v499, 2147483648
    %v512 = vor.u32 1.1754944e-38, %v511
    %v513 = vsel %vm510, %v512, %v508
    %v514 = vmul.f32 1.0, %v513
    %v515 = vtanh.pop %v495
    %v516 = vxor.u32 %v495, 2147483648
    %v517 = vmul.f32 %v516, 1.442695
    %v518 = vpow.pop %v517
    %v519 = vadd.f32 %v518, 1.0
    %v520 = vrcp.pop %v519
    %v521 = vmul.f32 %v519, %v520
    %v522 = vsub.f32 1.0, %v521
    %v523 = vmul.f32 %v520, %v522
    %v524 = vadd.f32 %v520, %v523
    %vm525 = vweird.f32 %v519
    %vm526 = vweird.f32 %v520
    %vm527 = vmor %vm525, %vm526
    %v528 = vsel %vm527, %v520, %v524
    %v529 = vand.u32 2147483647, %v519
    %vm530 = vcmp.eq.f32.partialorder %v529, 8.507059e+37
    %v531 = vand.u32 %v519, 2147483648
    %v532 = vor.u32 1.1754944e-38, %v531
    %v533 = vsel %vm530, %v532, %v528
    %v534 = vmul.f32 1.0, %v533
    %v535 = vmul.f32 %v514, %v451
    %v536 = vmul.f32 %v514, %v515
    %538 = vrot.lane.b32.xlu0 %v536, 64
    %v539 = vpop.permute.xlu0 %538
    %v541 = vadd.f32 %v535, %v539
    %v542 = vtanh.pop %v541
    %v543 = vmul.f32 %v534, %v542
    %545 = vrot.lane.b32.xlu0 %v543, 64
    %v546 = vpop.permute.xlu0 %545
    %548 = vst.msk [vmem:[#allocation3 + $0x10] sm:$0xff] %vm284, %v546
    %v549 = vld [vmem:[#allocation2 + $0x30] sm:$0xff]
    %v550 = vld [vmem:[#allocation2 + $0x38] sm:$0xff]
    %v551 = vpack.c.bf16 %v543, %v543
    %553 = vrot.lane.b32.xlu0 %v551, 64
    %v554 = vpop.permute.xlu0 %553
    %v556 = vsel %vm284, %v554, 0
    %558 = vmatpush.bf16.msra.mxu0 0
    %559 = vmatpush.bf16.msra.mxu0 0
    %560 = vmatpush.bf16.msra.mxu0 0
    %561 = vmatpush.bf16.msra.mxu0 0
    %562 = vmatpush.bf16.msra.mxu0 %v274
    %563 = vmatpush.bf16.msra.mxu0 %v272
    %564 = vmatpush.bf16.msra.mxu0 %v270
    %565 = vmatpush.bf16.msra.mxu0 %v268
    %566 = vmatmul.bf16.gmra.mxu0 %v556
    %v567 = vpop.f32.mrf.mxu0
    %v568 = vadd.f32 0.0, %v567
    %v569 = vpop.f32.mrf.mxu0
    %570 = vdwg.mxu0
    %571 = vmatpush.bf16.msra.mxu0 0
    %572 = vmatpush.bf16.msra.mxu0 0
    %573 = vmatpush.bf16.msra.mxu0 0
    %574 = vmatpush.bf16.msra.mxu0 0
    %575 = vmatpush.bf16.msra.mxu0 %v275
    %576 = vmatpush.bf16.msra.mxu0 %v273
    %577 = vmatpush.bf16.msra.mxu0 %v271
    %578 = vmatpush.bf16.msra.mxu0 %v269
    %579 = vmatmul.bf16.gmra.mxu0 %v556
    %v580 = vpop.f32.mrf.mxu0
    %v581 = vadd.f32 0.0, %v580
    %v582 = vpop.f32.mrf.mxu0
    %583 = vdwg.mxu0
    %v584 = vadd.f32 %v549, %v568
    %v585 = vadd.f32 %v550, %v581
    %v586 = vxor.u32 %v584, 2147483648
    %v587 = vmul.f32 %v586, 1.442695
    %v588 = vpow.pop %v587
    %v589 = vadd.f32 %v588, 1.0
    %v590 = vrcp.pop %v589
    %v591 = vmul.f32 %v589, %v590
    %v592 = vsub.f32 1.0, %v591
    %v593 = vmul.f32 %v590, %v592
    %v594 = vadd.f32 %v590, %v593
    %vm595 = vweird.f32 %v589
    %vm596 = vweird.f32 %v590
    %vm597 = vmor %vm595, %vm596
    %v598 = vsel %vm597, %v590, %v594
    %v599 = vand.u32 2147483647, %v589
    %vm600 = vcmp.eq.f32.partialorder %v599, 8.507059e+37
    %v601 = vand.u32 %v589, 2147483648
    %v602 = vor.u32 1.1754944e-38, %v601
    %v603 = vsel %vm600, %v602, %v598
    %v604 = vmul.f32 1.0, %v603
    %v605 = vtanh.pop %v585
    %v606 = vxor.u32 %v585, 2147483648
    %v607 = vmul.f32 %v606, 1.442695
    %v608 = vpow.pop %v607
    %v609 = vadd.f32 %v608, 1.0
    %v610 = vrcp.pop %v609
    %v611 = vmul.f32 %v609, %v610
    %v612 = vsub.f32 1.0, %v611
    %v613 = vmul.f32 %v610, %v612
    %v614 = vadd.f32 %v610, %v613
    %vm615 = vweird.f32 %v609
    %vm616 = vweird.f32 %v610
    %vm617 = vmor %vm615, %vm616
    %v618 = vsel %vm617, %v610, %v614
    %v619 = vand.u32 2147483647, %v609
    %vm620 = vcmp.eq.f32.partialorder %v619, 8.507059e+37
    %v621 = vand.u32 %v609, 2147483648
    %v622 = vor.u32 1.1754944e-38, %v621
    %v623 = vsel %vm620, %v622, %v618
    %v624 = vmul.f32 1.0, %v623
    %v625 = vmul.f32 %v604, %v541
    %v626 = vmul.f32 %v604, %v605
    %628 = vrot.lane.b32.xlu0 %v626, 64
    %v629 = vpop.permute.xlu0 %628
    %v631 = vadd.f32 %v625, %v629
    %v632 = vtanh.pop %v631
    %v633 = vmul.f32 %v624, %v632
    %635 = vrot.lane.b32.xlu0 %v633, 64
    %v636 = vpop.permute.xlu0 %635
    %638 = vst.msk [vmem:[#allocation3 + $0x18] sm:$0xff] %vm284, %v636
    %v639 = vld [vmem:[#allocation2 + $0x40] sm:$0xff]
    %v640 = vld [vmem:[#allocation2 + $0x48] sm:$0xff]
    %v641 = vpack.c.bf16 %v633, %v633
    %643 = vrot.lane.b32.xlu0 %v641, 64
    %v644 = vpop.permute.xlu0 %643
    %v646 = vsel %vm284, %v644, 0
    %648 = vmatpush.bf16.msra.mxu0 0
    %649 = vmatpush.bf16.msra.mxu0 0
    %650 = vmatpush.bf16.msra.mxu0 0
    %651 = vmatpush.bf16.msra.mxu0 0
    %652 = vmatpush.bf16.msra.mxu0 %v274
    %653 = vmatpush.bf16.msra.mxu0 %v272
    %654 = vmatpush.bf16.msra.mxu0 %v270
    %655 = vmatpush.bf16.msra.mxu0 %v268
    %656 = vmatmul.bf16.gmra.mxu0 %v646
    %v657 = vpop.f32.mrf.mxu0
    %v658 = vadd.f32 0.0, %v657
    %v659 = vpop.f32.mrf.mxu0
    %660 = vdwg.mxu0
    %661 = vmatpush.bf16.msra.mxu0 0
    %662 = vmatpush.bf16.msra.mxu0 0
    %663 = vmatpush.bf16.msra.mxu0 0
    %664 = vmatpush.bf16.msra.mxu0 0
    %665 = vmatpush.bf16.msra.mxu0 %v275
    %666 = vmatpush.bf16.msra.mxu0 %v273
    %667 = vmatpush.bf16.msra.mxu0 %v271
    %668 = vmatpush.bf16.msra.mxu0 %v269
    %669 = vmatmul.bf16.gmra.mxu0 %v646
    %v670 = vpop.f32.mrf.mxu0
    %v671 = vadd.f32 0.0, %v670
    %v672 = vpop.f32.mrf.mxu0
    %673 = vdwg.mxu0
    %v674 = vadd.f32 %v639, %v658
    %v675 = vadd.f32 %v640, %v671
    %v676 = vxor.u32 %v674, 2147483648
    %v677 = vmul.f32 %v676, 1.442695
    %v678 = vpow.pop %v677
    %v679 = vadd.f32 %v678, 1.0
    %v680 = vrcp.pop %v679
    %v681 = vmul.f32 %v679, %v680
    %v682 = vsub.f32 1.0, %v681
    %v683 = vmul.f32 %v680, %v682
    %v684 = vadd.f32 %v680, %v683
    %vm685 = vweird.f32 %v679
    %vm686 = vweird.f32 %v680
    %vm687 = vmor %vm685, %vm686
    %v688 = vsel %vm687, %v680, %v684
    %v689 = vand.u32 2147483647, %v679
    %vm690 = vcmp.eq.f32.partialorder %v689, 8.507059e+37
    %v691 = vand.u32 %v679, 2147483648
    %v692 = vor.u32 1.1754944e-38, %v691
    %v693 = vsel %vm690, %v692, %v688
    %v694 = vmul.f32 1.0, %v693
    %v695 = vtanh.pop %v675
    %v696 = vxor.u32 %v675, 2147483648
    %v697 = vmul.f32 %v696, 1.442695
    %v698 = vpow.pop %v697
    %v699 = vadd.f32 %v698, 1.0
    %v700 = vrcp.pop %v699
    %v701 = vmul.f32 %v699, %v700
    %v702 = vsub.f32 1.0, %v701
    %v703 = vmul.f32 %v700, %v702
    %v704 = vadd.f32 %v700, %v703
    %vm705 = vweird.f32 %v699
    %vm706 = vweird.f32 %v700
    %vm707 = vmor %vm705, %vm706
    %v708 = vsel %vm707, %v700, %v704
    %v709 = vand.u32 2147483647, %v699
    %vm710 = vcmp.eq.f32.partialorder %v709, 8.507059e+37
    %v711 = vand.u32 %v699, 2147483648
    %v712 = vor.u32 1.1754944e-38, %v711
    %v713 = vsel %vm710, %v712, %v708
    %v714 = vmul.f32 1.0, %v713
    %v715 = vmul.f32 %v694, %v631
    %v716 = vmul.f32 %v694, %v695
    %718 = vrot.lane.b32.xlu0 %v716, 64
    %v719 = vpop.permute.xlu0 %718
    %v721 = vadd.f32 %v715, %v719
    %v722 = vtanh.pop %v721
    %v723 = vmul.f32 %v714, %v722
    %725 = vrot.lane.b32.xlu0 %v723, 64
    %v726 = vpop.permute.xlu0 %725
    %728 = vst.msk [vmem:[#allocation3 + $0x20] sm:$0xff] %vm284, %v726
    %v729 = vld [vmem:[#allocation2 + $0x50] sm:$0xff]
    %v730 = vld [vmem:[#allocation2 + $0x58] sm:$0xff]
    %v731 = vpack.c.bf16 %v723, %v723
    %733 = vrot.lane.b32.xlu0 %v731, 64
    %v734 = vpop.permute.xlu0 %733
    %v736 = vsel %vm284, %v734, 0
    %738 = vmatpush.bf16.msra.mxu0 0
    %739 = vmatpush.bf16.msra.mxu0 0
    %740 = vmatpush.bf16.msra.mxu0 0
    %741 = vmatpush.bf16.msra.mxu0 0
    %742 = vmatpush.bf16.msra.mxu0 %v274
    %743 = vmatpush.bf16.msra.mxu0 %v272
    %744 = vmatpush.bf16.msra.mxu0 %v270
    %745 = vmatpush.bf16.msra.mxu0 %v268
    %746 = vmatmul.bf16.gmra.mxu0 %v736
    %v747 = vpop.f32.mrf.mxu0
    %v748 = vadd.f32 0.0, %v747
    %v749 = vpop.f32.mrf.mxu0
    %750 = vdwg.mxu0
    %751 = vmatpush.bf16.msra.mxu0 0
    %752 = vmatpush.bf16.msra.mxu0 0
    %753 = vmatpush.bf16.msra.mxu0 0
    %754 = vmatpush.bf16.msra.mxu0 0
    %755 = vmatpush.bf16.msra.mxu0 %v275
    %756 = vmatpush.bf16.msra.mxu0 %v273
    %757 = vmatpush.bf16.msra.mxu0 %v271
    %758 = vmatpush.bf16.msra.mxu0 %v269
    %759 = vmatmul.bf16.gmra.mxu0 %v736
    %v760 = vpop.f32.mrf.mxu0
    %v761 = vadd.f32 0.0, %v760
    %v762 = vpop.f32.mrf.mxu0
    %763 = vdwg.mxu0
    %v764 = vadd.f32 %v729, %v748
    %v765 = vadd.f32 %v730, %v761
    %v766 = vxor.u32 %v764, 2147483648
    %v767 = vmul.f32 %v766, 1.442695
    %v768 = vpow.pop %v767
    %v769 = vadd.f32 %v768, 1.0
    %v770 = vrcp.pop %v769
    %v771 = vmul.f32 %v769, %v770
    %v772 = vsub.f32 1.0, %v771
    %v773 = vmul.f32 %v770, %v772
    %v774 = vadd.f32 %v770, %v773
    %vm775 = vweird.f32 %v769
    %vm776 = vweird.f32 %v770
    %vm777 = vmor %vm775, %vm776
    %v778 = vsel %vm777, %v770, %v774
    %v779 = vand.u32 2147483647, %v769
    %vm780 = vcmp.eq.f32.partialorder %v779, 8.507059e+37
    %v781 = vand.u32 %v769, 2147483648
    %v782 = vor.u32 1.1754944e-38, %v781
    %v783 = vsel %vm780, %v782, %v778
    %v784 = vmul.f32 1.0, %v783
    %v785 = vtanh.pop %v765
    %v786 = vxor.u32 %v765, 2147483648
    %v787 = vmul.f32 %v786, 1.442695
    %v788 = vpow.pop %v787
    %v789 = vadd.f32 %v788, 1.0
    %v790 = vrcp.pop %v789
    %v791 = vmul.f32 %v789, %v790
    %v792 = vsub.f32 1.0, %v791
    %v793 = vmul.f32 %v790, %v792
    %v794 = vadd.f32 %v790, %v793
    %vm795 = vweird.f32 %v789
    %vm796 = vweird.f32 %v790
    %vm797 = vmor %vm795, %vm796
    %v798 = vsel %vm797, %v790, %v794
    %v799 = vand.u32 2147483647, %v789
    %vm800 = vcmp.eq.f32.partialorder %v799, 8.507059e+37
    %v801 = vand.u32 %v789, 2147483648
    %v802 = vor.u32 1.1754944e-38, %v801
    %v803 = vsel %vm800, %v802, %v798
    %v804 = vmul.f32 1.0, %v803
    %v805 = vmul.f32 %v784, %v721
    %v806 = vmul.f32 %v784, %v785
    %808 = vrot.lane.b32.xlu0 %v806, 64
    %v809 = vpop.permute.xlu0 %808
    %v811 = vadd.f32 %v805, %v809
    %v812 = vtanh.pop %v811
    %v813 = vmul.f32 %v804, %v812
    %815 = vrot.lane.b32.xlu0 %v813, 64
    %v816 = vpop.permute.xlu0 %815
    %818 = vst.msk [vmem:[#allocation3 + $0x28] sm:$0xff] %vm284, %v816
    %v819 = vld [vmem:[#allocation2 + $0x60] sm:$0xff]
    %v820 = vld [vmem:[#allocation2 + $0x68] sm:$0xff]
    %v821 = vpack.c.bf16 %v813, %v813
    %823 = vrot.lane.b32.xlu0 %v821, 64
    %v824 = vpop.permute.xlu0 %823
    %v826 = vsel %vm284, %v824, 0
    %828 = vmatpush.bf16.msra.mxu0 0
    %829 = vmatpush.bf16.msra.mxu0 0
    %830 = vmatpush.bf16.msra.mxu0 0
    %831 = vmatpush.bf16.msra.mxu0 0
    %832 = vmatpush.bf16.msra.mxu0 %v274
    %833 = vmatpush.bf16.msra.mxu0 %v272
    %834 = vmatpush.bf16.msra.mxu0 %v270
    %835 = vmatpush.bf16.msra.mxu0 %v268
    %836 = vmatmul.bf16.gmra.mxu0 %v826
    %v837 = vpop.f32.mrf.mxu0
    %v838 = vadd.f32 0.0, %v837
    %v839 = vpop.f32.mrf.mxu0
    %840 = vdwg.mxu0
    %841 = vmatpush.bf16.msra.mxu0 0
    %842 = vmatpush.bf16.msra.mxu0 0
    %843 = vmatpush.bf16.msra.mxu0 0
    %844 = vmatpush.bf16.msra.mxu0 0
    %845 = vmatpush.bf16.msra.mxu0 %v275
    %846 = vmatpush.bf16.msra.mxu0 %v273
    %847 = vmatpush.bf16.msra.mxu0 %v271
    %848 = vmatpush.bf16.msra.mxu0 %v269
    %849 = vmatmul.bf16.gmra.mxu0 %v826
    %v850 = vpop.f32.mrf.mxu0
    %v851 = vadd.f32 0.0, %v850
    %v852 = vpop.f32.mrf.mxu0
    %853 = vdwg.mxu0
    %v854 = vadd.f32 %v819, %v838
    %v855 = vadd.f32 %v820, %v851
    %v856 = vxor.u32 %v854, 2147483648
    %v857 = vmul.f32 %v856, 1.442695
    %v858 = vpow.pop %v857
    %v859 = vadd.f32 %v858, 1.0
    %v860 = vrcp.pop %v859
    %v861 = vmul.f32 %v859, %v860
    %v862 = vsub.f32 1.0, %v861
    %v863 = vmul.f32 %v860, %v862
    %v864 = vadd.f32 %v860, %v863
    %vm865 = vweird.f32 %v859
    %vm866 = vweird.f32 %v860
    %vm867 = vmor %vm865, %vm866
    %v868 = vsel %vm867, %v860, %v864
    %v869 = vand.u32 2147483647, %v859
    %vm870 = vcmp.eq.f32.partialorder %v869, 8.507059e+37
    %v871 = vand.u32 %v859, 2147483648
    %v872 = vor.u32 1.1754944e-38, %v871
    %v873 = vsel %vm870, %v872, %v868
    %v874 = vmul.f32 1.0, %v873
    %v875 = vtanh.pop %v855
    %v876 = vxor.u32 %v855, 2147483648
    %v877 = vmul.f32 %v876, 1.442695
    %v878 = vpow.pop %v877
    %v879 = vadd.f32 %v878, 1.0
    %v880 = vrcp.pop %v879
    %v881 = vmul.f32 %v879, %v880
    %v882 = vsub.f32 1.0, %v881
    %v883 = vmul.f32 %v880, %v882
    %v884 = vadd.f32 %v880, %v883
    %vm885 = vweird.f32 %v879
    %vm886 = vweird.f32 %v880
    %vm887 = vmor %vm885, %vm886
    %v888 = vsel %vm887, %v880, %v884
    %v889 = vand.u32 2147483647, %v879
    %vm890 = vcmp.eq.f32.partialorder %v889, 8.507059e+37
    %v891 = vand.u32 %v879, 2147483648
    %v892 = vor.u32 1.1754944e-38, %v891
    %v893 = vsel %vm890, %v892, %v888
    %v894 = vmul.f32 1.0, %v893
    %v895 = vmul.f32 %v874, %v811
    %v896 = vmul.f32 %v874, %v875
    %898 = vrot.lane.b32.xlu0 %v896, 64
    %v899 = vpop.permute.xlu0 %898
    %v901 = vadd.f32 %v895, %v899
    %v902 = vtanh.pop %v901
    %v903 = vmul.f32 %v894, %v902
    %905 = vrot.lane.b32.xlu0 %v903, 64
    %v906 = vpop.permute.xlu0 %905
    %908 = vst.msk [vmem:[#allocation3 + $0x30] sm:$0xff] %vm284, %v906
    %v909 = vld [vmem:[#allocation2 + $0x70] sm:$0xff]
    %v910 = vld [vmem:[#allocation2 + $0x78] sm:$0xff]
    %v911 = vpack.c.bf16 %v903, %v903
    %913 = vrot.lane.b32.xlu0 %v911, 64
    %v914 = vpop.permute.xlu0 %913
    %v916 = vsel %vm284, %v914, 0
    %918 = vmatpush.bf16.msra.mxu0 0
    %919 = vmatpush.bf16.msra.mxu0 0
    %920 = vmatpush.bf16.msra.mxu0 0
    %921 = vmatpush.bf16.msra.mxu0 0
    %922 = vmatpush.bf16.msra.mxu0 %v274
    %923 = vmatpush.bf16.msra.mxu0 %v272
    %924 = vmatpush.bf16.msra.mxu0 %v270
    %925 = vmatpush.bf16.msra.mxu0 %v268
    %926 = vmatmul.bf16.gmra.mxu0 %v916
    %v927 = vpop.f32.mrf.mxu0
    %v928 = vadd.f32 0.0, %v927
    %v929 = vpop.f32.mrf.mxu0
    %930 = vdwg.mxu0
    %931 = vmatpush.bf16.msra.mxu0 0
    %932 = vmatpush.bf16.msra.mxu0 0
    %933 = vmatpush.bf16.msra.mxu0 0
    %934 = vmatpush.bf16.msra.mxu0 0
    %935 = vmatpush.bf16.msra.mxu0 %v275
    %936 = vmatpush.bf16.msra.mxu0 %v273
    %937 = vmatpush.bf16.msra.mxu0 %v271
    %938 = vmatpush.bf16.msra.mxu0 %v269
    %939 = vmatmul.bf16.gmra.mxu0 %v916
    %v940 = vpop.f32.mrf.mxu0
    %v941 = vadd.f32 0.0, %v940
    %v942 = vpop.f32.mrf.mxu0
    %943 = vdwg.mxu0
    %v944 = vadd.f32 %v909, %v928
    %v945 = vadd.f32 %v910, %v941
    %v946 = vxor.u32 %v944, 2147483648
    %v947 = vmul.f32 %v946, 1.442695
    %v948 = vpow.pop %v947
    %v949 = vadd.f32 %v948, 1.0
    %v950 = vrcp.pop %v949
    %v951 = vmul.f32 %v949, %v950
    %v952 = vsub.f32 1.0, %v951
    %v953 = vmul.f32 %v950, %v952
    %v954 = vadd.f32 %v950, %v953
    %vm955 = vweird.f32 %v949
    %vm956 = vweird.f32 %v950
    %vm957 = vmor %vm955, %vm956
    %v958 = vsel %vm957, %v950, %v954
    %v959 = vand.u32 2147483647, %v949
    %vm960 = vcmp.eq.f32.partialorder %v959, 8.507059e+37
    %v961 = vand.u32 %v949, 2147483648
    %v962 = vor.u32 1.1754944e-38, %v961
    %v963 = vsel %vm960, %v962, %v958
    %v964 = vmul.f32 1.0, %v963
    %v965 = vtanh.pop %v945
    %v966 = vxor.u32 %v945, 2147483648
    %v967 = vmul.f32 %v966, 1.442695
    %v968 = vpow.pop %v967
    %v969 = vadd.f32 %v968, 1.0
    %v970 = vrcp.pop %v969
    %v971 = vmul.f32 %v969, %v970
    %v972 = vsub.f32 1.0, %v971
    %v973 = vmul.f32 %v970, %v972
    %v974 = vadd.f32 %v970, %v973
    %vm975 = vweird.f32 %v969
    %vm976 = vweird.f32 %v970
    %vm977 = vmor %vm975, %vm976
    %v978 = vsel %vm977, %v970, %v974
    %v979 = vand.u32 2147483647, %v969
    %vm980 = vcmp.eq.f32.partialorder %v979, 8.507059e+37
    %v981 = vand.u32 %v969, 2147483648
    %v982 = vor.u32 1.1754944e-38, %v981
    %v983 = vsel %vm980, %v982, %v978
    %v984 = vmul.f32 1.0, %v983
    %v985 = vmul.f32 %v964, %v901
    %v986 = vmul.f32 %v964, %v965
    %988 = vrot.lane.b32.xlu0 %v986, 64
    %v989 = vpop.permute.xlu0 %988
    %v991 = vadd.f32 %v985, %v989
    %v992 = vtanh.pop %v991
    %v993 = vmul.f32 %v984, %v992
    %995 = vrot.lane.b32.xlu0 %v993, 64
    %v996 = vpop.permute.xlu0 %995
    %998 = vst.msk [vmem:[#allocation3 + $0x38] sm:$0xff] %vm284, %v996
    %v999 = vld [vmem:[#allocation2 + $0x80] sm:$0xff]
    %v1000 = vld [vmem:[#allocation2 + $0x88] sm:$0xff]
    %v1001 = vpack.c.bf16 %v993, %v993
    %1003 = vrot.lane.b32.xlu0 %v1001, 64
    %v1004 = vpop.permute.xlu0 %1003
    %v1006 = vsel %vm284, %v1004, 0
    %1008 = vmatpush.bf16.msra.mxu0 0
    %1009 = vmatpush.bf16.msra.mxu0 0
    %1010 = vmatpush.bf16.msra.mxu0 0
    %1011 = vmatpush.bf16.msra.mxu0 0
    %1012 = vmatpush.bf16.msra.mxu0 %v274
    %1013 = vmatpush.bf16.msra.mxu0 %v272
    %1014 = vmatpush.bf16.msra.mxu0 %v270
    %1015 = vmatpush.bf16.msra.mxu0 %v268
    %1016 = vmatmul.bf16.gmra.mxu0 %v1006
    %v1017 = vpop.f32.mrf.mxu0
    %v1018 = vadd.f32 0.0, %v1017
    %v1019 = vpop.f32.mrf.mxu0
    %1020 = vdwg.mxu0
    %1021 = vmatpush.bf16.msra.mxu0 0
    %1022 = vmatpush.bf16.msra.mxu0 0
    %1023 = vmatpush.bf16.msra.mxu0 0
    %1024 = vmatpush.bf16.msra.mxu0 0
    %1025 = vmatpush.bf16.msra.mxu0 %v275
    %1026 = vmatpush.bf16.msra.mxu0 %v273
    %1027 = vmatpush.bf16.msra.mxu0 %v271
    %1028 = vmatpush.bf16.msra.mxu0 %v269
    %1029 = vmatmul.bf16.gmra.mxu0 %v1006
    %v1030 = vpop.f32.mrf.mxu0
    %v1031 = vadd.f32 0.0, %v1030
    %v1032 = vpop.f32.mrf.mxu0
    %1033 = vdwg.mxu0
    %v1034 = vadd.f32 %v999, %v1018
    %v1035 = vadd.f32 %v1000, %v1031
    %v1036 = vxor.u32 %v1034, 2147483648
    %v1037 = vmul.f32 %v1036, 1.442695
    %v1038 = vpow.pop %v1037
    %v1039 = vadd.f32 %v1038, 1.0
    %v1040 = vrcp.pop %v1039
    %v1041 = vmul.f32 %v1039, %v1040
    %v1042 = vsub.f32 1.0, %v1041
    %v1043 = vmul.f32 %v1040, %v1042
    %v1044 = vadd.f32 %v1040, %v1043
    %vm1045 = vweird.f32 %v1039
    %vm1046 = vweird.f32 %v1040
    %vm1047 = vmor %vm1045, %vm1046
    %v1048 = vsel %vm1047, %v1040, %v1044
    %v1049 = vand.u32 2147483647, %v1039
    %vm1050 = vcmp.eq.f32.partialorder %v1049, 8.507059e+37
    %v1051 = vand.u32 %v1039, 2147483648
    %v1052 = vor.u32 1.1754944e-38, %v1051
    %v1053 = vsel %vm1050, %v1052, %v1048
    %v1054 = vmul.f32 1.0, %v1053
    %v1055 = vtanh.pop %v1035
    %v1056 = vxor.u32 %v1035, 2147483648
    %v1057 = vmul.f32 %v1056, 1.442695
    %v1058 = vpow.pop %v1057
    %v1059 = vadd.f32 %v1058, 1.0
    %v1060 = vrcp.pop %v1059
    %v1061 = vmul.f32 %v1059, %v1060
    %v1062 = vsub.f32 1.0, %v1061
    %v1063 = vmul.f32 %v1060, %v1062
    %v1064 = vadd.f32 %v1060, %v1063
    %vm1065 = vweird.f32 %v1059
    %vm1066 = vweird.f32 %v1060
    %vm1067 = vmor %vm1065, %vm1066
    %v1068 = vsel %vm1067, %v1060, %v1064
    %v1069 = vand.u32 2147483647, %v1059
    %vm1070 = vcmp.eq.f32.partialorder %v1069, 8.507059e+37
    %v1071 = vand.u32 %v1059, 2147483648
    %v1072 = vor.u32 1.1754944e-38, %v1071
    %v1073 = vsel %vm1070, %v1072, %v1068
    %v1074 = vmul.f32 1.0, %v1073
    %v1075 = vmul.f32 %v1054, %v991
    %v1076 = vmul.f32 %v1054, %v1055
    %1078 = vrot.lane.b32.xlu0 %v1076, 64
    %v1079 = vpop.permute.xlu0 %1078
    %v1081 = vadd.f32 %v1075, %v1079
    %v1082 = vtanh.pop %v1081
    %v1083 = vmul.f32 %v1074, %v1082
    %1085 = vrot.lane.b32.xlu0 %v1083, 64
    %v1086 = vpop.permute.xlu0 %1085
    %1088 = vst.msk [vmem:[#allocation3 + $0x40] sm:$0xff] %vm284, %v1086
    %v1089 = vld [vmem:[#allocation2 + $0x90] sm:$0xff]
    %v1090 = vld [vmem:[#allocation2 + $0x98] sm:$0xff]
    %v1091 = vpack.c.bf16 %v1083, %v1083
    %1093 = vrot.lane.b32.xlu0 %v1091, 64
    %v1094 = vpop.permute.xlu0 %1093
    %v1096 = vsel %vm284, %v1094, 0
    %1098 = vmatpush.bf16.msra.mxu0 0
    %1099 = vmatpush.bf16.msra.mxu0 0
    %1100 = vmatpush.bf16.msra.mxu0 0
    %1101 = vmatpush.bf16.msra.mxu0 0
    %1102 = vmatpush.bf16.msra.mxu0 %v274
    %1103 = vmatpush.bf16.msra.mxu0 %v272
    %1104 = vmatpush.bf16.msra.mxu0 %v270
    %1105 = vmatpush.bf16.msra.mxu0 %v268
    %1106 = vmatmul.bf16.gmra.mxu0 %v1096
    %v1107 = vpop.f32.mrf.mxu0
    %v1108 = vadd.f32 0.0, %v1107
    %v1109 = vpop.f32.mrf.mxu0
    %1110 = vdwg.mxu0
    %1111 = vmatpush.bf16.msra.mxu0 0
    %1112 = vmatpush.bf16.msra.mxu0 0
    %1113 = vmatpush.bf16.msra.mxu0 0
    %1114 = vmatpush.bf16.msra.mxu0 0
    %1115 = vmatpush.bf16.msra.mxu0 %v275
    %1116 = vmatpush.bf16.msra.mxu0 %v273
    %1117 = vmatpush.bf16.msra.mxu0 %v271
    %1118 = vmatpush.bf16.msra.mxu0 %v269
    %1119 = vmatmul.bf16.gmra.mxu0 %v1096
    %v1120 = vpop.f32.mrf.mxu0
    %v1121 = vadd.f32 0.0, %v1120
    %v1122 = vpop.f32.mrf.mxu0
    %1123 = vdwg.mxu0
    %v1124 = vadd.f32 %v1089, %v1108
    %v1125 = vadd.f32 %v1090, %v1121
    %v1126 = vxor.u32 %v1124, 2147483648
    %v1127 = vmul.f32 %v1126, 1.442695
    %v1128 = vpow.pop %v1127
    %v1129 = vadd.f32 %v1128, 1.0
    %v1130 = vrcp.pop %v1129
    %v1131 = vmul.f32 %v1129, %v1130
    %v1132 = vsub.f32 1.0, %v1131
    %v1133 = vmul.f32 %v1130, %v1132
    %v1134 = vadd.f32 %v1130, %v1133
    %vm1135 = vweird.f32 %v1129
    %vm1136 = vweird.f32 %v1130
    %vm1137 = vmor %vm1135, %vm1136
    %v1138 = vsel %vm1137, %v1130, %v1134
    %v1139 = vand.u32 2147483647, %v1129
    %vm1140 = vcmp.eq.f32.partialorder %v1139, 8.507059e+37
    %v1141 = vand.u32 %v1129, 2147483648
    %v1142 = vor.u32 1.1754944e-38, %v1141
    %v1143 = vsel %vm1140, %v1142, %v1138
    %v1144 = vmul.f32 1.0, %v1143
    %v1145 = vtanh.pop %v1125
    %v1146 = vxor.u32 %v1125, 2147483648
    %v1147 = vmul.f32 %v1146, 1.442695
    %v1148 = vpow.pop %v1147
    %v1149 = vadd.f32 %v1148, 1.0
    %v1150 = vrcp.pop %v1149
    %v1151 = vmul.f32 %v1149, %v1150
    %v1152 = vsub.f32 1.0, %v1151
    %v1153 = vmul.f32 %v1150, %v1152
    %v1154 = vadd.f32 %v1150, %v1153
    %vm1155 = vweird.f32 %v1149
    %vm1156 = vweird.f32 %v1150
    %vm1157 = vmor %vm1155, %vm1156
    %v1158 = vsel %vm1157, %v1150, %v1154
    %v1159 = vand.u32 2147483647, %v1149
    %vm1160 = vcmp.eq.f32.partialorder %v1159, 8.507059e+37
    %v1161 = vand.u32 %v1149, 2147483648
    %v1162 = vor.u32 1.1754944e-38, %v1161
    %v1163 = vsel %vm1160, %v1162, %v1158
    %v1164 = vmul.f32 1.0, %v1163
    %v1165 = vmul.f32 %v1144, %v1081
    %v1166 = vmul.f32 %v1144, %v1145
    %1168 = vrot.lane.b32.xlu0 %v1166, 64
    %v1169 = vpop.permute.xlu0 %1168
    %v1171 = vadd.f32 %v1165, %v1169
    %v1172 = vtanh.pop %v1171
    %v1173 = vmul.f32 %v1164, %v1172
    %1175 = vrot.lane.b32.xlu0 %v1173, 64
    %v1176 = vpop.permute.xlu0 %1175
    %1178 = vst.msk [vmem:[#allocation3 + $0x48] sm:$0xff] %vm284, %v1176
    %v1179 = vld [vmem:[#allocation2 + $0xa0] sm:$0xff]
    %v1180 = vld [vmem:[#allocation2 + $0xa8] sm:$0xff]
    %v1181 = vpack.c.bf16 %v1173, %v1173
    %1183 = vrot.lane.b32.xlu0 %v1181, 64
    %v1184 = vpop.permute.xlu0 %1183
    %v1186 = vsel %vm284, %v1184, 0
    %1188 = vmatpush.bf16.msra.mxu0 0
    %1189 = vmatpush.bf16.msra.mxu0 0
    %1190 = vmatpush.bf16.msra.mxu0 0
    %1191 = vmatpush.bf16.msra.mxu0 0
    %1192 = vmatpush.bf16.msra.mxu0 %v274
    %1193 = vmatpush.bf16.msra.mxu0 %v272
    %1194 = vmatpush.bf16.msra.mxu0 %v270
    %1195 = vmatpush.bf16.msra.mxu0 %v268
    %1196 = vmatmul.bf16.gmra.mxu0 %v1186
    %v1197 = vpop.f32.mrf.mxu0
    %v1198 = vadd.f32 0.0, %v1197
    %v1199 = vpop.f32.mrf.mxu0
    %1200 = vdwg.mxu0
    %1201 = vmatpush.bf16.msra.mxu0 0
    %1202 = vmatpush.bf16.msra.mxu0 0
    %1203 = vmatpush.bf16.msra.mxu0 0
    %1204 = vmatpush.bf16.msra.mxu0 0
    %1205 = vmatpush.bf16.msra.mxu0 %v275
    %1206 = vmatpush.bf16.msra.mxu0 %v273
    %1207 = vmatpush.bf16.msra.mxu0 %v271
    %1208 = vmatpush.bf16.msra.mxu0 %v269
    %1209 = vmatmul.bf16.gmra.mxu0 %v1186
    %v1210 = vpop.f32.mrf.mxu0
    %v1211 = vadd.f32 0.0, %v1210
    %v1212 = vpop.f32.mrf.mxu0
    %1213 = vdwg.mxu0
    %v1214 = vadd.f32 %v1179, %v1198
    %v1215 = vadd.f32 %v1180, %v1211
    %v1216 = vxor.u32 %v1214, 2147483648
    %v1217 = vmul.f32 %v1216, 1.442695
    %v1218 = vpow.pop %v1217
    %v1219 = vadd.f32 %v1218, 1.0
    %v1220 = vrcp.pop %v1219
    %v1221 = vmul.f32 %v1219, %v1220
    %v1222 = vsub.f32 1.0, %v1221
    %v1223 = vmul.f32 %v1220, %v1222
    %v1224 = vadd.f32 %v1220, %v1223
    %vm1225 = vweird.f32 %v1219
    %vm1226 = vweird.f32 %v1220
    %vm1227 = vmor %vm1225, %vm1226
    %v1228 = vsel %vm1227, %v1220, %v1224
    %v1229 = vand.u32 2147483647, %v1219
    %vm1230 = vcmp.eq.f32.partialorder %v1229, 8.507059e+37
    %v1231 = vand.u32 %v1219, 2147483648
    %v1232 = vor.u32 1.1754944e-38, %v1231
    %v1233 = vsel %vm1230, %v1232, %v1228
    %v1234 = vmul.f32 1.0, %v1233
    %v1235 = vtanh.pop %v1215
    %v1236 = vxor.u32 %v1215, 2147483648
    %v1237 = vmul.f32 %v1236, 1.442695
    %v1238 = vpow.pop %v1237
    %v1239 = vadd.f32 %v1238, 1.0
    %v1240 = vrcp.pop %v1239
    %v1241 = vmul.f32 %v1239, %v1240
    %v1242 = vsub.f32 1.0, %v1241
    %v1243 = vmul.f32 %v1240, %v1242
    %v1244 = vadd.f32 %v1240, %v1243
    %vm1245 = vweird.f32 %v1239
    %vm1246 = vweird.f32 %v1240
    %vm1247 = vmor %vm1245, %vm1246
    %v1248 = vsel %vm1247, %v1240, %v1244
    %v1249 = vand.u32 2147483647, %v1239
    %vm1250 = vcmp.eq.f32.partialorder %v1249, 8.507059e+37
    %v1251 = vand.u32 %v1239, 2147483648
    %v1252 = vor.u32 1.1754944e-38, %v1251
    %v1253 = vsel %vm1250, %v1252, %v1248
    %v1254 = vmul.f32 1.0, %v1253
    %v1255 = vmul.f32 %v1234, %v1171
    %v1256 = vmul.f32 %v1234, %v1235
    %1258 = vrot.lane.b32.xlu0 %v1256, 64
    %v1259 = vpop.permute.xlu0 %1258
    %v1261 = vadd.f32 %v1255, %v1259
    %v1262 = vtanh.pop %v1261
    %v1263 = vmul.f32 %v1254, %v1262
    %1265 = vrot.lane.b32.xlu0 %v1263, 64
    %v1266 = vpop.permute.xlu0 %1265
    %1268 = vst.msk [vmem:[#allocation3 + $0x50] sm:$0xff] %vm284, %v1266
    %v1269 = vld [vmem:[#allocation2 + $0xb0] sm:$0xff]
    %v1270 = vld [vmem:[#allocation2 + $0xb8] sm:$0xff]
    %v1271 = vpack.c.bf16 %v1263, %v1263
    %1273 = vrot.lane.b32.xlu0 %v1271, 64
    %v1274 = vpop.permute.xlu0 %1273
    %v1276 = vsel %vm284, %v1274, 0
    %1278 = vmatpush.bf16.msra.mxu0 0
    %1279 = vmatpush.bf16.msra.mxu0 0
    %1280 = vmatpush.bf16.msra.mxu0 0
    %1281 = vmatpush.bf16.msra.mxu0 0
    %1282 = vmatpush.bf16.msra.mxu0 %v274
    %1283 = vmatpush.bf16.msra.mxu0 %v272
    %1284 = vmatpush.bf16.msra.mxu0 %v270
    %1285 = vmatpush.bf16.msra.mxu0 %v268
    %1286 = vmatmul.bf16.gmra.mxu0 %v1276
    %v1287 = vpop.f32.mrf.mxu0
    %v1288 = vadd.f32 0.0, %v1287
    %v1289 = vpop.f32.mrf.mxu0
    %1290 = vdwg.mxu0
    %1291 = vmatpush.bf16.msra.mxu0 0
    %1292 = vmatpush.bf16.msra.mxu0 0
    %1293 = vmatpush.bf16.msra.mxu0 0
    %1294 = vmatpush.bf16.msra.mxu0 0
    %1295 = vmatpush.bf16.msra.mxu0 %v275
    %1296 = vmatpush.bf16.msra.mxu0 %v273
    %1297 = vmatpush.bf16.msra.mxu0 %v271
    %1298 = vmatpush.bf16.msra.mxu0 %v269
    %1299 = vmatmul.bf16.gmra.mxu0 %v1276
    %v1300 = vpop.f32.mrf.mxu0
    %v1301 = vadd.f32 0.0, %v1300
    %v1302 = vpop.f32.mrf.mxu0
    %1303 = vdwg.mxu0
    %v1304 = vadd.f32 %v1269, %v1288
    %v1305 = vadd.f32 %v1270, %v1301
    %v1306 = vxor.u32 %v1304, 2147483648
    %v1307 = vmul.f32 %v1306, 1.442695
    %v1308 = vpow.pop %v1307
    %v1309 = vadd.f32 %v1308, 1.0
    %v1310 = vrcp.pop %v1309
    %v1311 = vmul.f32 %v1309, %v1310
    %v1312 = vsub.f32 1.0, %v1311
    %v1313 = vmul.f32 %v1310, %v1312
    %v1314 = vadd.f32 %v1310, %v1313
    %vm1315 = vweird.f32 %v1309
    %vm1316 = vweird.f32 %v1310
    %vm1317 = vmor %vm1315, %vm1316
    %v1318 = vsel %vm1317, %v1310, %v1314
    %v1319 = vand.u32 2147483647, %v1309
    %vm1320 = vcmp.eq.f32.partialorder %v1319, 8.507059e+37
    %v1321 = vand.u32 %v1309, 2147483648
    %v1322 = vor.u32 1.1754944e-38, %v1321
    %v1323 = vsel %vm1320, %v1322, %v1318
    %v1324 = vmul.f32 1.0, %v1323
    %v1325 = vtanh.pop %v1305
    %v1326 = vxor.u32 %v1305, 2147483648
    %v1327 = vmul.f32 %v1326, 1.442695
    %v1328 = vpow.pop %v1327
    %v1329 = vadd.f32 %v1328, 1.0
    %v1330 = vrcp.pop %v1329
    %v1331 = vmul.f32 %v1329, %v1330
    %v1332 = vsub.f32 1.0, %v1331
    %v1333 = vmul.f32 %v1330, %v1332
    %v1334 = vadd.f32 %v1330, %v1333
    %vm1335 = vweird.f32 %v1329
    %vm1336 = vweird.f32 %v1330
    %vm1337 = vmor %vm1335, %vm1336
    %v1338 = vsel %vm1337, %v1330, %v1334
    %v1339 = vand.u32 2147483647, %v1329
    %vm1340 = vcmp.eq.f32.partialorder %v1339, 8.507059e+37
    %v1341 = vand.u32 %v1329, 2147483648
    %v1342 = vor.u32 1.1754944e-38, %v1341
    %v1343 = vsel %vm1340, %v1342, %v1338
    %v1344 = vmul.f32 1.0, %v1343
    %v1345 = vmul.f32 %v1324, %v1261
    %v1346 = vmul.f32 %v1324, %v1325
    %1348 = vrot.lane.b32.xlu0 %v1346, 64
    %v1349 = vpop.permute.xlu0 %1348
    %v1351 = vadd.f32 %v1345, %v1349
    %v1352 = vtanh.pop %v1351
    %v1353 = vmul.f32 %v1344, %v1352
    %1355 = vrot.lane.b32.xlu0 %v1353, 64
    %v1356 = vpop.permute.xlu0 %1355
    %1358 = vst.msk [vmem:[#allocation3 + $0x58] sm:$0xff] %vm284, %v1356
    %v1359 = vld [vmem:[#allocation2 + $0xc0] sm:$0xff]
    %v1360 = vld [vmem:[#allocation2 + $0xc8] sm:$0xff]
    %v1361 = vpack.c.bf16 %v1353, %v1353
    %1363 = vrot.lane.b32.xlu0 %v1361, 64
    %v1364 = vpop.permute.xlu0 %1363
    %v1366 = vsel %vm284, %v1364, 0
    %1368 = vmatpush.bf16.msra.mxu0 0
    %1369 = vmatpush.bf16.msra.mxu0 0
    %1370 = vmatpush.bf16.msra.mxu0 0
    %1371 = vmatpush.bf16.msra.mxu0 0
    %1372 = vmatpush.bf16.msra.mxu0 %v274
    %1373 = vmatpush.bf16.msra.mxu0 %v272
    %1374 = vmatpush.bf16.msra.mxu0 %v270
    %1375 = vmatpush.bf16.msra.mxu0 %v268
    %1376 = vmatmul.bf16.gmra.mxu0 %v1366
    %v1377 = vpop.f32.mrf.mxu0
    %v1378 = vadd.f32 0.0, %v1377
    %v1379 = vpop.f32.mrf.mxu0
    %1380 = vdwg.mxu0
    %1381 = vmatpush.bf16.msra.mxu0 0
    %1382 = vmatpush.bf16.msra.mxu0 0
    %1383 = vmatpush.bf16.msra.mxu0 0
    %1384 = vmatpush.bf16.msra.mxu0 0
    %1385 = vmatpush.bf16.msra.mxu0 %v275
    %1386 = vmatpush.bf16.msra.mxu0 %v273
    %1387 = vmatpush.bf16.msra.mxu0 %v271
    %1388 = vmatpush.bf16.msra.mxu0 %v269
    %1389 = vmatmul.bf16.gmra.mxu0 %v1366
    %v1390 = vpop.f32.mrf.mxu0
    %v1391 = vadd.f32 0.0, %v1390
    %v1392 = vpop.f32.mrf.mxu0
    %1393 = vdwg.mxu0
    %v1394 = vadd.f32 %v1359, %v1378
    %v1395 = vadd.f32 %v1360, %v1391
    %v1396 = vxor.u32 %v1394, 2147483648
    %v1397 = vmul.f32 %v1396, 1.442695
    %v1398 = vpow.pop %v1397
    %v1399 = vadd.f32 %v1398, 1.0
    %v1400 = vrcp.pop %v1399
    %v1401 = vmul.f32 %v1399, %v1400
    %v1402 = vsub.f32 1.0, %v1401
    %v1403 = vmul.f32 %v1400, %v1402
    %v1404 = vadd.f32 %v1400, %v1403
    %vm1405 = vweird.f32 %v1399
    %vm1406 = vweird.f32 %v1400
    %vm1407 = vmor %vm1405, %vm1406
    %v1408 = vsel %vm1407, %v1400, %v1404
    %v1409 = vand.u32 2147483647, %v1399
    %vm1410 = vcmp.eq.f32.partialorder %v1409, 8.507059e+37
    %v1411 = vand.u32 %v1399, 2147483648
    %v1412 = vor.u32 1.1754944e-38, %v1411
    %v1413 = vsel %vm1410, %v1412, %v1408
    %v1414 = vmul.f32 1.0, %v1413
    %v1415 = vtanh.pop %v1395
    %v1416 = vxor.u32 %v1395, 2147483648
    %v1417 = vmul.f32 %v1416, 1.442695
    %v1418 = vpow.pop %v1417
    %v1419 = vadd.f32 %v1418, 1.0
    %v1420 = vrcp.pop %v1419
    %v1421 = vmul.f32 %v1419, %v1420
    %v1422 = vsub.f32 1.0, %v1421
    %v1423 = vmul.f32 %v1420, %v1422
    %v1424 = vadd.f32 %v1420, %v1423
    %vm1425 = vweird.f32 %v1419
    %vm1426 = vweird.f32 %v1420
    %vm1427 = vmor %vm1425, %vm1426
    %v1428 = vsel %vm1427, %v1420, %v1424
    %v1429 = vand.u32 2147483647, %v1419
    %vm1430 = vcmp.eq.f32.partialorder %v1429, 8.507059e+37
    %v1431 = vand.u32 %v1419, 2147483648
    %v1432 = vor.u32 1.1754944e-38, %v1431
    %v1433 = vsel %vm1430, %v1432, %v1428
    %v1434 = vmul.f32 1.0, %v1433
    %v1435 = vmul.f32 %v1414, %v1351
    %v1436 = vmul.f32 %v1414, %v1415
    %1438 = vrot.lane.b32.xlu0 %v1436, 64
    %v1439 = vpop.permute.xlu0 %1438
    %v1441 = vadd.f32 %v1435, %v1439
    %v1442 = vtanh.pop %v1441
    %v1443 = vmul.f32 %v1434, %v1442
    %1445 = vrot.lane.b32.xlu0 %v1443, 64
    %v1446 = vpop.permute.xlu0 %1445
    %1448 = vst.msk [vmem:[#allocation3 + $0x60] sm:$0xff] %vm284, %v1446
    %v1449 = vld [vmem:[#allocation2 + $0xd0] sm:$0xff]
    %v1450 = vld [vmem:[#allocation2 + $0xd8] sm:$0xff]
    %v1451 = vpack.c.bf16 %v1443, %v1443
    %1453 = vrot.lane.b32.xlu0 %v1451, 64
    %v1454 = vpop.permute.xlu0 %1453
    %v1456 = vsel %vm284, %v1454, 0
    %1458 = vmatpush.bf16.msra.mxu0 0
    %1459 = vmatpush.bf16.msra.mxu0 0
    %1460 = vmatpush.bf16.msra.mxu0 0
    %1461 = vmatpush.bf16.msra.mxu0 0
    %1462 = vmatpush.bf16.msra.mxu0 %v274
    %1463 = vmatpush.bf16.msra.mxu0 %v272
    %1464 = vmatpush.bf16.msra.mxu0 %v270
    %1465 = vmatpush.bf16.msra.mxu0 %v268
    %1466 = vmatmul.bf16.gmra.mxu0 %v1456
    %v1467 = vpop.f32.mrf.mxu0
    %v1468 = vadd.f32 0.0, %v1467
    %v1469 = vpop.f32.mrf.mxu0
    %1470 = vdwg.mxu0
    %1471 = vmatpush.bf16.msra.mxu0 0
    %1472 = vmatpush.bf16.msra.mxu0 0
    %1473 = vmatpush.bf16.msra.mxu0 0
    %1474 = vmatpush.bf16.msra.mxu0 0
    %1475 = vmatpush.bf16.msra.mxu0 %v275
    %1476 = vmatpush.bf16.msra.mxu0 %v273
    %1477 = vmatpush.bf16.msra.mxu0 %v271
    %1478 = vmatpush.bf16.msra.mxu0 %v269
    %1479 = vmatmul.bf16.gmra.mxu0 %v1456
    %v1480 = vpop.f32.mrf.mxu0
    %v1481 = vadd.f32 0.0, %v1480
    %v1482 = vpop.f32.mrf.mxu0
    %1483 = vdwg.mxu0
    %v1484 = vadd.f32 %v1449, %v1468
    %v1485 = vadd.f32 %v1450, %v1481
    %v1486 = vxor.u32 %v1484, 2147483648
    %v1487 = vmul.f32 %v1486, 1.442695
    %v1488 = vpow.pop %v1487
    %v1489 = vadd.f32 %v1488, 1.0
    %v1490 = vrcp.pop %v1489
    %v1491 = vmul.f32 %v1489, %v1490
    %v1492 = vsub.f32 1.0, %v1491
    %v1493 = vmul.f32 %v1490, %v1492
    %v1494 = vadd.f32 %v1490, %v1493
    %vm1495 = vweird.f32 %v1489
    %vm1496 = vweird.f32 %v1490
    %vm1497 = vmor %vm1495, %vm1496
    %v1498 = vsel %vm1497, %v1490, %v1494
    %v1499 = vand.u32 2147483647, %v1489
    %vm1500 = vcmp.eq.f32.partialorder %v1499, 8.507059e+37
    %v1501 = vand.u32 %v1489, 2147483648
    %v1502 = vor.u32 1.1754944e-38, %v1501
    %v1503 = vsel %vm1500, %v1502, %v1498
    %v1504 = vmul.f32 1.0, %v1503
    %v1505 = vtanh.pop %v1485
    %v1506 = vxor.u32 %v1485, 2147483648
    %v1507 = vmul.f32 %v1506, 1.442695
    %v1508 = vpow.pop %v1507
    %v1509 = vadd.f32 %v1508, 1.0
    %v1510 = vrcp.pop %v1509
    %v1511 = vmul.f32 %v1509, %v1510
    %v1512 = vsub.f32 1.0, %v1511
    %v1513 = vmul.f32 %v1510, %v1512
    %v1514 = vadd.f32 %v1510, %v1513
    %vm1515 = vweird.f32 %v1509
    %vm1516 = vweird.f32 %v1510
    %vm1517 = vmor %vm1515, %vm1516
    %v1518 = vsel %vm1517, %v1510, %v1514
    %v1519 = vand.u32 2147483647, %v1509
    %vm1520 = vcmp.eq.f32.partialorder %v1519, 8.507059e+37
    %v1521 = vand.u32 %v1509, 2147483648
    %v1522 = vor.u32 1.1754944e-38, %v1521
    %v1523 = vsel %vm1520, %v1522, %v1518
    %v1524 = vmul.f32 1.0, %v1523
    %v1525 = vmul.f32 %v1504, %v1441
    %v1526 = vmul.f32 %v1504, %v1505
    %1528 = vrot.lane.b32.xlu0 %v1526, 64
    %v1529 = vpop.permute.xlu0 %1528
    %v1531 = vadd.f32 %v1525, %v1529
    %v1532 = vtanh.pop %v1531
    %v1533 = vmul.f32 %v1524, %v1532
    %1535 = vrot.lane.b32.xlu0 %v1533, 64
    %v1536 = vpop.permute.xlu0 %1535
    %1538 = vst.msk [vmem:[#allocation3 + $0x68] sm:$0xff] %vm284, %v1536
    %v1539 = vld [vmem:[#allocation2 + $0xe0] sm:$0xff]
    %v1540 = vld [vmem:[#allocation2 + $0xe8] sm:$0xff]
    %v1541 = vpack.c.bf16 %v1533, %v1533
    %1543 = vrot.lane.b32.xlu0 %v1541, 64
    %v1544 = vpop.permute.xlu0 %1543
    %v1546 = vsel %vm284, %v1544, 0
    %1548 = vmatpush.bf16.msra.mxu0 0
    %1549 = vmatpush.bf16.msra.mxu0 0
    %1550 = vmatpush.bf16.msra.mxu0 0
    %1551 = vmatpush.bf16.msra.mxu0 0
    %1552 = vmatpush.bf16.msra.mxu0 %v274
    %1553 = vmatpush.bf16.msra.mxu0 %v272
    %1554 = vmatpush.bf16.msra.mxu0 %v270
    %1555 = vmatpush.bf16.msra.mxu0 %v268
    %1556 = vmatmul.bf16.gmra.mxu0 %v1546
    %v1557 = vpop.f32.mrf.mxu0
    %v1558 = vadd.f32 0.0, %v1557
    %v1559 = vpop.f32.mrf.mxu0
    %1560 = vdwg.mxu0
    %1561 = vmatpush.bf16.msra.mxu0 0
    %1562 = vmatpush.bf16.msra.mxu0 0
    %1563 = vmatpush.bf16.msra.mxu0 0
    %1564 = vmatpush.bf16.msra.mxu0 0
    %1565 = vmatpush.bf16.msra.mxu0 %v275
    %1566 = vmatpush.bf16.msra.mxu0 %v273
    %1567 = vmatpush.bf16.msra.mxu0 %v271
    %1568 = vmatpush.bf16.msra.mxu0 %v269
    %1569 = vmatmul.bf16.gmra.mxu0 %v1546
    %v1570 = vpop.f32.mrf.mxu0
    %v1571 = vadd.f32 0.0, %v1570
    %v1572 = vpop.f32.mrf.mxu0
    %1573 = vdwg.mxu0
    %v1574 = vadd.f32 %v1539, %v1558
    %v1575 = vadd.f32 %v1540, %v1571
    %v1576 = vxor.u32 %v1574, 2147483648
    %v1577 = vmul.f32 %v1576, 1.442695
    %v1578 = vpow.pop %v1577
    %v1579 = vadd.f32 %v1578, 1.0
    %v1580 = vrcp.pop %v1579
    %v1581 = vmul.f32 %v1579, %v1580
    %v1582 = vsub.f32 1.0, %v1581
    %v1583 = vmul.f32 %v1580, %v1582
    %v1584 = vadd.f32 %v1580, %v1583
    %vm1585 = vweird.f32 %v1579
    %vm1586 = vweird.f32 %v1580
    %vm1587 = vmor %vm1585, %vm1586
    %v1588 = vsel %vm1587, %v1580, %v1584
    %v1589 = vand.u32 2147483647, %v1579
    %vm1590 = vcmp.eq.f32.partialorder %v1589, 8.507059e+37
    %v1591 = vand.u32 %v1579, 2147483648
    %v1592 = vor.u32 1.1754944e-38, %v1591
    %v1593 = vsel %vm1590, %v1592, %v1588
    %v1594 = vmul.f32 1.0, %v1593
    %v1595 = vtanh.pop %v1575
    %v1596 = vxor.u32 %v1575, 2147483648
    %v1597 = vmul.f32 %v1596, 1.442695
    %v1598 = vpow.pop %v1597
    %v1599 = vadd.f32 %v1598, 1.0
    %v1600 = vrcp.pop %v1599
    %v1601 = vmul.f32 %v1599, %v1600
    %v1602 = vsub.f32 1.0, %v1601
    %v1603 = vmul.f32 %v1600, %v1602
    %v1604 = vadd.f32 %v1600, %v1603
    %vm1605 = vweird.f32 %v1599
    %vm1606 = vweird.f32 %v1600
    %vm1607 = vmor %vm1605, %vm1606
    %v1608 = vsel %vm1607, %v1600, %v1604
    %v1609 = vand.u32 2147483647, %v1599
    %vm1610 = vcmp.eq.f32.partialorder %v1609, 8.507059e+37
    %v1611 = vand.u32 %v1599, 2147483648
    %v1612 = vor.u32 1.1754944e-38, %v1611
    %v1613 = vsel %vm1610, %v1612, %v1608
    %v1614 = vmul.f32 1.0, %v1613
    %v1615 = vmul.f32 %v1594, %v1531
    %v1616 = vmul.f32 %v1594, %v1595
    %1618 = vrot.lane.b32.xlu0 %v1616, 64
    %v1619 = vpop.permute.xlu0 %1618
    %v1621 = vadd.f32 %v1615, %v1619
    %v1622 = vtanh.pop %v1621
    %v1623 = vmul.f32 %v1614, %v1622
    %1625 = vrot.lane.b32.xlu0 %v1623, 64
    %v1626 = vpop.permute.xlu0 %1625
    %1628 = vst.msk [vmem:[#allocation3 + $0x70] sm:$0xff] %vm284, %v1626
    %v1629 = vld [vmem:[#allocation2 + $0xf0] sm:$0xff]
    %v1630 = vld [vmem:[#allocation2 + $0xf8] sm:$0xff]
    %v1631 = vpack.c.bf16 %v1623, %v1623
    %1633 = vrot.lane.b32.xlu0 %v1631, 64
    %v1634 = vpop.permute.xlu0 %1633
    %v1636 = vsel %vm284, %v1634, 0
    %1638 = vmatpush.bf16.msra.mxu0 0
    %1639 = vmatpush.bf16.msra.mxu0 0
    %1640 = vmatpush.bf16.msra.mxu0 0
    %1641 = vmatpush.bf16.msra.mxu0 0
    %1642 = vmatpush.bf16.msra.mxu0 %v274
    %1643 = vmatpush.bf16.msra.mxu0 %v272
    %1644 = vmatpush.bf16.msra.mxu0 %v270
    %1645 = vmatpush.bf16.msra.mxu0 %v268
    %1646 = vmatmul.bf16.gmra.mxu0 %v1636
    %v1647 = vpop.f32.mrf.mxu0
    %v1648 = vadd.f32 0.0, %v1647
    %v1649 = vpop.f32.mrf.mxu0
    %1650 = vdwg.mxu0
    %1651 = vmatpush.bf16.msra.mxu0 0
    %1652 = vmatpush.bf16.msra.mxu0 0
    %1653 = vmatpush.bf16.msra.mxu0 0
    %1654 = vmatpush.bf16.msra.mxu0 0
    %1655 = vmatpush.bf16.msra.mxu0 %v275
    %1656 = vmatpush.bf16.msra.mxu0 %v273
    %1657 = vmatpush.bf16.msra.mxu0 %v271
    %1658 = vmatpush.bf16.msra.mxu0 %v269
    %1659 = vmatmul.bf16.gmra.mxu0 %v1636
    %v1660 = vpop.f32.mrf.mxu0
    %v1661 = vadd.f32 0.0, %v1660
    %v1662 = vpop.f32.mrf.mxu0
    %1663 = vdwg.mxu0
    %v1664 = vadd.f32 %v1629, %v1648
    %v1665 = vadd.f32 %v1630, %v1661
    %v1666 = vxor.u32 %v1664, 2147483648
    %v1667 = vmul.f32 %v1666, 1.442695
    %v1668 = vpow.pop %v1667
    %v1669 = vadd.f32 %v1668, 1.0
    %v1670 = vrcp.pop %v1669
    %v1671 = vmul.f32 %v1669, %v1670
    %v1672 = vsub.f32 1.0, %v1671
    %v1673 = vmul.f32 %v1670, %v1672
    %v1674 = vadd.f32 %v1670, %v1673
    %vm1675 = vweird.f32 %v1669
    %vm1676 = vweird.f32 %v1670
    %vm1677 = vmor %vm1675, %vm1676
    %v1678 = vsel %vm1677, %v1670, %v1674
    %v1679 = vand.u32 2147483647, %v1669
    %vm1680 = vcmp.eq.f32.partialorder %v1679, 8.507059e+37
    %v1681 = vand.u32 %v1669, 2147483648
    %v1682 = vor.u32 1.1754944e-38, %v1681
    %v1683 = vsel %vm1680, %v1682, %v1678
    %v1684 = vmul.f32 1.0, %v1683
    %v1685 = vtanh.pop %v1665
    %v1686 = vxor.u32 %v1665, 2147483648
    %v1687 = vmul.f32 %v1686, 1.442695
    %v1688 = vpow.pop %v1687
    %v1689 = vadd.f32 %v1688, 1.0
    %v1690 = vrcp.pop %v1689
    %v1691 = vmul.f32 %v1689, %v1690
    %v1692 = vsub.f32 1.0, %v1691
    %v1693 = vmul.f32 %v1690, %v1692
    %v1694 = vadd.f32 %v1690, %v1693
    %vm1695 = vweird.f32 %v1689
    %vm1696 = vweird.f32 %v1690
    %vm1697 = vmor %vm1695, %vm1696
    %v1698 = vsel %vm1697, %v1690, %v1694
    %v1699 = vand.u32 2147483647, %v1689
    %vm1700 = vcmp.eq.f32.partialorder %v1699, 8.507059e+37
    %v1701 = vand.u32 %v1689, 2147483648
    %v1702 = vor.u32 1.1754944e-38, %v1701
    %v1703 = vsel %vm1700, %v1702, %v1698
    %v1704 = vmul.f32 1.0, %v1703
    %v1705 = vmul.f32 %v1684, %v1621
    %v1706 = vmul.f32 %v1684, %v1685
    %1708 = vrot.lane.b32.xlu0 %v1706, 64
    %v1709 = vpop.permute.xlu0 %1708
    %v1711 = vadd.f32 %v1705, %v1709
    %v1712 = vtanh.pop %v1711
    %v1713 = vmul.f32 %v1704, %v1712
    %1715 = vrot.lane.b32.xlu0 %v1713, 64
    %v1716 = vpop.permute.xlu0 %1715
    %1718 = vst.msk [vmem:[#allocation3 + $0x78] sm:$0xff] %vm284, %v1716
    %v1719 = vld [vmem:[#allocation3] sm:$0xff]
    %v1720 = vld [vmem:[#allocation3 + $0x8] sm:$0xff]
    %v1721 = vld [vmem:[#allocation3 + $0x10] sm:$0xff]
    %v1722 = vld [vmem:[#allocation3 + $0x18] sm:$0xff]
    %v1723 = vld [vmem:[#allocation3 + $0x20] sm:$0xff]
    %v1724 = vld [vmem:[#allocation3 + $0x28] sm:$0xff]
    %v1725 = vld [vmem:[#allocation3 + $0x30] sm:$0xff]
    %v1726 = vld [vmem:[#allocation3 + $0x38] sm:$0xff]
    %v1727 = vld [vmem:[#allocation3 + $0x40] sm:$0xff]
    %v1728 = vld [vmem:[#allocation3 + $0x48] sm:$0xff]
    %v1729 = vld [vmem:[#allocation3 + $0x50] sm:$0xff]
    %v1730 = vld [vmem:[#allocation3 + $0x58] sm:$0xff]
    %v1731 = vld [vmem:[#allocation3 + $0x60] sm:$0xff]
    %v1732 = vld [vmem:[#allocation3 + $0x68] sm:$0xff]
    %v1733 = vld [vmem:[#allocation3 + $0x70] sm:$0xff]
    %v1734 = vld [vmem:[#allocation3 + $0x78] sm:$0xff]
    %v1735 = vpack.c.bf16 %v1720, %v1719
    %v1736 = vpack.c.bf16 %v1722, %v1721
    %v1737 = vpack.c.bf16 %v1724, %v1723
    %v1738 = vpack.c.bf16 %v1726, %v1725
    %v1739 = vpack.c.bf16 %v1728, %v1727
    %v1740 = vpack.c.bf16 %v1730, %v1729
    %v1741 = vpack.c.bf16 %v1732, %v1731
    %v1742 = vpack.c.bf16 %v1734, %v1733
    %v1743 = vld [vmem:[%s4] sm:$0xf]
    %v1744 = vld [vmem:[%s4 + $0x4] sm:$0xf]
    %v1745 = vld [vmem:[%s4 + $0x8] sm:$0xf]
    %v1746 = vld [vmem:[%s4 + $0xc] sm:$0xf]
    %v1747 = vld [vmem:[%s4 + $0x10] sm:$0xf]
    %v1748 = vld [vmem:[%s4 + $0x14] sm:$0xf]
    %v1749 = vld [vmem:[%s4 + $0x18] sm:$0xf]
    %v1750 = vld [vmem:[%s4 + $0x1c] sm:$0xf]
    %v1751 = vld [vmem:[%s5] sm:$0x1]
    %v1753 = vperm.slane %v1751, 0
    %v1763 = vunpack.c.l.b16 %v1743
    %v1764 = vunpack.c.l.b16 %v1744
    %v1765 = vunpack.c.l.b16 %v1745
    %v1766 = vunpack.c.l.b16 %v1746
    %v1767 = vunpack.c.l.b16 %v1747
    %v1768 = vunpack.c.l.b16 %v1748
    %v1769 = vunpack.c.l.b16 %v1749
    %v1770 = vunpack.c.l.b16 %v1750
    %v1771 = vpack.c.b16 %v1764, %v1763
    %v1772 = vpack.c.b16 %v1766, %v1765
    %v1773 = vpack.c.b16 %v1768, %v1767
    %v1774 = vpack.c.b16 %v1770, %v1769
    %v1780 = vsel %vm284, %v1735, 0
    %v1783 = vsel %vm284, %v1736, 0
    %v1786 = vsel %vm284, %v1737, 0
    %v1789 = vsel %vm284, %v1738, 0
    %v1792 = vsel %vm284, %v1739, 0
    %v1795 = vsel %vm284, %v1740, 0
    %v1798 = vsel %vm284, %v1741, 0
    %v1801 = vsel %vm284, %v1742, 0
    %1803 = vmatpush.bf16.msra.mxu0 0
    %1804 = vmatpush.bf16.msra.mxu0 0
    %1805 = vmatpush.bf16.msra.mxu0 0
    %1806 = vmatpush.bf16.msra.mxu0 0
    %1807 = vmatpush.bf16.msra.mxu0 %v1774
    %1808 = vmatpush.bf16.msra.mxu0 %v1773
    %1809 = vmatpush.bf16.msra.mxu0 %v1772
    %1810 = vmatpush.bf16.msra.mxu0 %v1771
    %1811 = vmatmul.bf16.gmra.mxu0 %v1780
    %v1812 = vpop.f32.mrf.mxu0
    %v1813 = vadd.f32 %v1753, %v1812
    %v1814 = vpop.f32.mrf.mxu0
    %v1815 = vadd.f32 %v1753, %v1814
    %1816 = vmatmul.bf16.gmra.mxu0 %v1783
    %v1817 = vpop.f32.mrf.mxu0
    %v1818 = vadd.f32 %v1753, %v1817
    %v1819 = vpop.f32.mrf.mxu0
    %v1820 = vadd.f32 %v1753, %v1819
    %1821 = vmatmul.bf16.gmra.mxu0 %v1786
    %v1822 = vpop.f32.mrf.mxu0
    %v1823 = vadd.f32 %v1753, %v1822
    %v1824 = vpop.f32.mrf.mxu0
    %v1825 = vadd.f32 %v1753, %v1824
    %1826 = vmatmul.bf16.gmra.mxu0 %v1789
    %v1827 = vpop.f32.mrf.mxu0
    %v1828 = vadd.f32 %v1753, %v1827
    %v1829 = vpop.f32.mrf.mxu0
    %v1830 = vadd.f32 %v1753, %v1829
    %1831 = vmatmul.bf16.gmra.mxu0 %v1792
    %v1832 = vpop.f32.mrf.mxu0
    %v1833 = vadd.f32 %v1753, %v1832
    %v1834 = vpop.f32.mrf.mxu0
    %v1835 = vadd.f32 %v1753, %v1834
    %1836 = vmatmul.bf16.gmra.mxu0 %v1795
    %v1837 = vpop.f32.mrf.mxu0
    %v1838 = vadd.f32 %v1753, %v1837
    %v1839 = vpop.f32.mrf.mxu0
    %v1840 = vadd.f32 %v1753, %v1839
    %1841 = vmatmul.bf16.gmra.mxu0 %v1798
    %v1842 = vpop.f32.mrf.mxu0
    %v1843 = vadd.f32 %v1753, %v1842
    %v1844 = vpop.f32.mrf.mxu0
    %v1845 = vadd.f32 %v1753, %v1844
    %1846 = vmatmul.bf16.gmra.mxu0 %v1801
    %v1847 = vpop.f32.mrf.mxu0
    %v1848 = vadd.f32 %v1753, %v1847
    %v1849 = vpop.f32.mrf.mxu0
    %v1850 = vadd.f32 %v1753, %v1849
    %1851 = vdwg.mxu0
    %1852 = vst [vmem:[#allocation4] sm:$0xff] %v1813
    %1853 = vst [vmem:[#allocation4 + $0x8] sm:$0xff] %v1815
    %1854 = vst [vmem:[#allocation4 + $0x10] sm:$0xff] %v1818
    %1855 = vst [vmem:[#allocation4 + $0x18] sm:$0xff] %v1820
    %1856 = vst [vmem:[#allocation4 + $0x20] sm:$0xff] %v1823
    %1857 = vst [vmem:[#allocation4 + $0x28] sm:$0xff] %v1825
    %1858 = vst [vmem:[#allocation4 + $0x30] sm:$0xff] %v1828
    %1859 = vst [vmem:[#allocation4 + $0x38] sm:$0xff] %v1830
    %1860 = vst [vmem:[#allocation4 + $0x40] sm:$0xff] %v1833
    %1861 = vst [vmem:[#allocation4 + $0x48] sm:$0xff] %v1835
    %1862 = vst [vmem:[#allocation4 + $0x50] sm:$0xff] %v1838
    %1863 = vst [vmem:[#allocation4 + $0x58] sm:$0xff] %v1840
    %1864 = vst [vmem:[#allocation4 + $0x60] sm:$0xff] %v1843
    %1865 = vst [vmem:[#allocation4 + $0x68] sm:$0xff] %v1845
    %1866 = vst [vmem:[#allocation4 + $0x70] sm:$0xff] %v1848
    %1867 = vst [vmem:[#allocation4 + $0x78] sm:$0xff] %v1850
    // Predicated region
    $region26: #{tpu_custom_call.1} parent=1 // pred_check
      _
    $region27: #{tpu_custom_call.1} parent=1 // pred_check_branch
      %1869 = sbr.rel (0) target = $region29
    $region28: #{tpu_custom_call.1} parent=1 // pred_region
      %1871 = vsyncadd [#allocation5], 0
      %s1872 = sshll.u32 [#allocation4], 4
      %s1873 = int_to_ptr.vmem [resolvable:$true] %s1872
      %s1874 = sshll.u32 %s6, 4
      %s1875 = int_to_ptr.hbm [resolvable:$true] %s1874
      %1880 = dma.vmem_to_hbm [thread:$0]  %s1873, 2048, %s1875, [#allocation5], 128, 128, 8
    $region29: #{tpu_custom_call.1} parent=1 // pred_fallthru
      _
    // Predicated region
    $region30: #{tpu_custom_call.1} parent=1 // pred_check
      _
    $region31: #{tpu_custom_call.1} parent=1 // pred_check_branch
      %1882 = sbr.rel (0) target = $region33
    $region32: #{tpu_custom_call.1} parent=1 // pred_region
      %1884 = dma.done [#allocation5], 2048
    $region33: #{tpu_custom_call.1} parent=1 // pred_fallthru
      _
    %1885 = vsyncpa [#allocation5], 1

</llo_original>
